<compile_context>
chip_gen: v6e
topology: v6e:2x2x1
jax: 0.10.0
libtpu: 0.0.40
codegen_flags: <defaults>
</compile_context>

<pallas_src>
import functools

import numpy as np
import jax
import jax.numpy as jnp
from jax.experimental import pallas as pl
from jax.experimental.pallas import tpu as pltpu


def _pose_geo_kernel(xyz_ref, x_ref, scale_ref, phase_ref, o_ref, *,
                     in_dim, two_feat, cx):
    """One (batch, N-tile) grid step.

    xyz_ref  : (in_dim, TN)       coordinates, spatial points on lanes
    x_ref    : (Cx, TN)           input features (pass-through)
    scale_ref: (2*feat_dim, 1)    beta / alpha**(f/feat_dim), sin/cos-interleaved
    phase_ref: (2*feat_dim, 1)    0 for sin rows, pi/2 for cos rows
    o_ref    : (Cx + out_dim, TN) concat([knn_x, position_embed]) tile
    """
    # 1) knn_x pass-through: region store, no concat temporary.
    #    TODO(synk): if Cx is not a multiple of 8 this store is sublane-unaligned
    #    (still correct, just slower); pad knn_x channels host-side in that case.
    o_ref[:cx, :] = x_ref[...]

    scale = scale_ref[...]          # (two_feat, 1) f32
    phase = phase_ref[...]          # (two_feat, 1) f32

    # 2) positional embedding, one coordinate slab at a time (in_dim is tiny,
    #    the Python loop unrolls). Live working set = one (two_feat, TN) slab.
    for d in range(in_dim):
        coord = xyz_ref[d:d + 1, :].astype(jnp.float32)        # (1, TN)
        arg = coord * scale + phase                             # (two_feat, TN)
        o_ref[pl.ds(cx + d * two_feat, two_feat), :] = \
            jnp.sin(arg).astype(o_ref.dtype)


def pose_geo(knn_xyz, knn_x, *, out_dim, alpha, beta, tile_n=1024):
    B, in_dim, G, K = knn_xyz.shape
    Bx, Cx, Gx, Kx = knn_x.shape
    assert (B, G, K) == (Bx, Gx, Kx), "knn_xyz / knn_x shape mismatch"
    assert out_dim % (in_dim * 2) == 0, "out_dim must be divisible by 2*in_dim"
    feat_dim = out_dim // (in_dim * 2)
    two_feat = 2 * feat_dim
    N = G * K
    c_total = Cx + out_dim
    out_dtype = knn_x.dtype

    # Free reshapes (contiguous): spatial dim G*K becomes the lane axis.
    xyz = knn_xyz.reshape(B, in_dim, N)
    x = knn_x.reshape(B, Cx, N)

    # Keep every tile lane-dense: pad the spatial axis to a multiple of 128
    # only when needed (extra lanes are masked out on writeback / sliced off).
    n_pad = ((N + 127) // 128) * 128
    if n_pad != N:
        xyz = jnp.pad(xyz, ((0, 0), (0, 0), (0, n_pad - N)))
        x = jnp.pad(x, ((0, 0), (0, 0), (0, n_pad - N)))

    tn = min(int(tile_n), n_pad)
    tn = max(128, (tn // 128) * 128)
    grid = (B, pl.cdiv(n_pad, tn))

    # Host-side constants in the exact PyTorch channel order
    #   chan = d*(2*feat_dim) + 2*f  (sin),  +1 (cos)
    # cos(x) == sin(x + pi/2), so a per-row phase reproduces the interleave.
    f_range = np.arange(feat_dim, dtype=np.float32)
    dim_embed = np.power(np.float32(alpha), f_range / np.float32(feat_dim))
    scale_np = np.repeat(np.float32(beta) / dim_embed, 2).reshape(two_feat, 1)
    phase_np = np.tile(np.array([0.0, np.pi / 2], np.float32),
                       feat_dim).reshape(two_feat, 1)
    scale = jnp.asarray(scale_np, dtype=jnp.float32)
    phase = jnp.asarray(phase_np, dtype=jnp.float32)

    kernel = functools.partial(_pose_geo_kernel,
                               in_dim=in_dim, two_feat=two_feat, cx=Cx)

    out = pl.pallas_call(
        kernel,
        out_shape=jax.ShapeDtypeStruct((B, c_total, n_pad), out_dtype),
        grid=grid,
        in_specs=[
            pl.BlockSpec((None, in_dim, tn), lambda b, n: (b, 0, n)),
            pl.BlockSpec((None, Cx, tn), lambda b, n: (b, 0, n)),
            # Tiny constants: same block every step -> stay resident in VMEM.
            pl.BlockSpec((two_feat, 1), lambda b, n: (0, 0)),
            pl.BlockSpec((two_feat, 1), lambda b, n: (0, 0)),
        ],
        out_specs=pl.BlockSpec((None, c_total, tn), lambda b, n: (b, 0, n)),
        compiler_params=pltpu.CompilerParams(
            dimension_semantics=("parallel", "parallel")),
    )(xyz, x, scale, phase)

    if n_pad != N:
        out = out[:, :, :N]
    return out.reshape(B, c_total, G, K)


# ---------------------------------------------------------------------------
# Pure-JAX reference (mirrors the PyTorch forward op-for-op)
# ---------------------------------------------------------------------------
def pose_geo_reference(knn_xyz, knn_x, out_dim, alpha, beta):
    B, in_dim, G, K = knn_xyz.shape
    feat_dim = out_dim // (in_dim * 2)
    feat_range = jnp.arange(feat_dim, dtype=jnp.float32)
    dim_embed = jnp.power(jnp.float32(alpha), feat_range / feat_dim)
    div_embed = (beta * knn_xyz[..., None]) / dim_embed            # [B,in,G,K,feat]
    sin_embed = jnp.sin(div_embed)
    cos_embed = jnp.cos(div_embed)
    pos = jnp.stack([sin_embed, cos_embed], axis=5).reshape(B, in_dim, G, K, 2 * feat_dim)
    pos = jnp.transpose(pos, (0, 1, 4, 2, 3)).reshape(B, out_dim, G, K)
    return jnp.concatenate([knn_x, pos], axis=1)


if __name__ == "__main__":
    B, in_dim, G, K = 2, 3, 32, 16          # N = G*K = 512 spatial points
    Cx = 32                                  # knn_x feature channels (mult. of 8)
    out_dim = 48                             # -> feat_dim = 8
    alpha, beta = 1000.0, 100.0

    key = jax.random.PRNGKey(0)
    k1, k2 = jax.random.split(key)
    knn_xyz = jax.random.normal(k1, (B, in_dim, G, K), jnp.float32)
    knn_x = jax.random.normal(k2, (B, Cx, G, K), jnp.float32)

    fwd = jax.jit(functools.partial(pose_geo, out_dim=out_dim, alpha=alpha, beta=beta))
    out = jax.block_until_ready(fwd(knn_xyz, knn_x))

    ref = pose_geo_reference(knn_xyz, knn_x, out_dim, alpha, beta)
    assert out.shape == (B, Cx + out_dim, G, K), out.shape
    assert out.dtype == knn_x.dtype, out.dtype
    assert bool(jnp.all(jnp.isfinite(out)))
    assert bool(jnp.allclose(out, ref, rtol=2e-3, atol=2e-3)), \
        float(jnp.max(jnp.abs(out - ref)))
    print("KERNEL_OK")
</pallas_src>

<mosaic_0001>
module attributes {stable_mosaic.version = 11 : i64} {
  func.func @_pose_geo_kernel(%arg0: i32, %arg1: i32, %arg2: memref<1x3x512xf32, #tpu.memory_space<vmem>>, %arg3: memref<1x32x512xf32, #tpu.memory_space<vmem>>, %arg4: memref<16x1xf32, #tpu.memory_space<vmem>>, %arg5: memref<16x1xf32, #tpu.memory_space<vmem>>, %arg6: memref<1x80x512xf32, #tpu.memory_space<vmem>>) attributes {dimension_semantics = [#tpu.dimension_semantics<parallel>, #tpu.dimension_semantics<parallel>], iteration_bounds = array<i64: 2, 1>, scalar_prefetch = 0 : i64, scratch_operands = 0 : i64, tpu.core_type = #tpu.core_type<tc>, window_params = [{transform_indices = @transform_0, window_bounds = array<i64: 1, 3, 512>}, {transform_indices = @transform_1, window_bounds = array<i64: 1, 32, 512>}, {pipeline_mode = #tpu.pipeline_mode<synchronous>, transform_indices = @transform_2, window_bounds = array<i64: 16, 1>}, {pipeline_mode = #tpu.pipeline_mode<synchronous>, transform_indices = @transform_3, window_bounds = array<i64: 16, 1>}, {transform_indices = @transform_4, window_bounds = array<i64: 1, 80, 512>}]} {
    %c0 = arith.constant 0 : index
    %c0_0 = arith.constant 0 : index
    %c0_1 = arith.constant 0 : index
    %0 = vector.load %arg3[%c0, %c0_0, %c0_1] : memref<1x32x512xf32, #tpu.memory_space<vmem>>, vector<1x32x512xf32>
    %1 = vector.shape_cast %0 : vector<1x32x512xf32> to vector<32x512xf32>
    %c0_2 = arith.constant 0 : index
    %c0_3 = arith.constant 0 : index
    %c0_4 = arith.constant 0 : index
    %2 = vector.load %arg6[%c0_2, %c0_3, %c0_4] : memref<1x80x512xf32, #tpu.memory_space<vmem>>, vector<1x32x512xf32>
    %3 = vector.shape_cast %2 : vector<1x32x512xf32> to vector<32x512xf32>
    %4 = vector.shape_cast %1 : vector<32x512xf32> to vector<1x32x512xf32>
    tpu.vector_store %arg6[%c0_2, %c0_3, %c0_4], %4 {strides = array<i32>} : memref<1x80x512xf32, #tpu.memory_space<vmem>>, vector<1x32x512xf32>,
    %c0_5 = arith.constant 0 : index
    %c0_6 = arith.constant 0 : index
    %5 = vector.load %arg4[%c0_5, %c0_6] : memref<16x1xf32, #tpu.memory_space<vmem>>, vector<16x1xf32>
    %c0_7 = arith.constant 0 : index
    %c0_8 = arith.constant 0 : index
    %6 = vector.load %arg5[%c0_7, %c0_8] : memref<16x1xf32, #tpu.memory_space<vmem>>, vector<16x1xf32>
    %c0_9 = arith.constant 0 : index
    %c0_10 = arith.constant 0 : index
    %c0_11 = arith.constant 0 : index
    %7 = vector.load %arg2[%c0_9, %c0_10, %c0_11] : memref<1x3x512xf32, #tpu.memory_space<vmem>>, vector<1x1x512xf32>
    %8 = vector.shape_cast %7 : vector<1x1x512xf32> to vector<1x512xf32>
    %9 = vector.broadcast %8 : vector<1x512xf32> to vector<16x512xf32>
    %10 = vector.broadcast %5 : vector<16x1xf32> to vector<16x512xf32>
    %11 = arith.mulf %9, %10 : vector<16x512xf32>
    %12 = vector.broadcast %6 : vector<16x1xf32> to vector<16x512xf32>
    %13 = arith.addf %11, %12 : vector<16x512xf32>
    %14 = math.sin %13 : vector<16x512xf32>
    %c0_12 = arith.constant 0 : index
    %c32 = arith.constant 32 : index
    %c0_13 = arith.constant 0 : index
    %15 = vector.load %arg6[%c0_12, %c32, %c0_13] : memref<1x80x512xf32, #tpu.memory_space<vmem>>, vector<1x16x512xf32>
    %16 = vector.shape_cast %15 : vector<1x16x512xf32> to vector<16x512xf32>
    %17 = vector.shape_cast %14 : vector<16x512xf32> to vector<1x16x512xf32>
    tpu.vector_store %arg6[%c0_12, %c32, %c0_13], %17 {strides = array<i32>} : memref<1x80x512xf32, #tpu.memory_space<vmem>>, vector<1x16x512xf32>,
    %c0_14 = arith.constant 0 : index
    %c1 = arith.constant 1 : index
    %c0_15 = arith.constant 0 : index
    %18 = vector.load %arg2[%c0_14, %c1, %c0_15] : memref<1x3x512xf32, #tpu.memory_space<vmem>>, vector<1x1x512xf32>
    %19 = vector.shape_cast %18 : vector<1x1x512xf32> to vector<1x512xf32>
    %20 = vector.broadcast %19 : vector<1x512xf32> to vector<16x512xf32>
    %21 = vector.broadcast %5 : vector<16x1xf32> to vector<16x512xf32>
    %22 = arith.mulf %20, %21 : vector<16x512xf32>
    %23 = vector.broadcast %6 : vector<16x1xf32> to vector<16x512xf32>
    %24 = arith.addf %22, %23 : vector<16x512xf32>
    %25 = math.sin %24 : vector<16x512xf32>
    %c0_16 = arith.constant 0 : index
    %c48 = arith.constant 48 : index
    %c0_17 = arith.constant 0 : index
    %26 = vector.load %arg6[%c0_16, %c48, %c0_17] : memref<1x80x512xf32, #tpu.memory_space<vmem>>, vector<1x16x512xf32>
    %27 = vector.shape_cast %26 : vector<1x16x512xf32> to vector<16x512xf32>
    %28 = vector.shape_cast %25 : vector<16x512xf32> to vector<1x16x512xf32>
    tpu.vector_store %arg6[%c0_16, %c48, %c0_17], %28 {strides = array<i32>} : memref<1x80x512xf32, #tpu.memory_space<vmem>>, vector<1x16x512xf32>,
    %c0_18 = arith.constant 0 : index
    %c2 = arith.constant 2 : index
    %c0_19 = arith.constant 0 : index
    %29 = vector.load %arg2[%c0_18, %c2, %c0_19] : memref<1x3x512xf32, #tpu.memory_space<vmem>>, vector<1x1x512xf32>
    %30 = vector.shape_cast %29 : vector<1x1x512xf32> to vector<1x512xf32>
    %31 = vector.broadcast %30 : vector<1x512xf32> to vector<16x512xf32>
    %32 = vector.broadcast %5 : vector<16x1xf32> to vector<16x512xf32>
    %33 = arith.mulf %31, %32 : vector<16x512xf32>
    %34 = vector.broadcast %6 : vector<16x1xf32> to vector<16x512xf32>
    %35 = arith.addf %33, %34 : vector<16x512xf32>
    %36 = math.sin %35 : vector<16x512xf32>
    %c0_20 = arith.constant 0 : index
    %c64 = arith.constant 64 : index
    %c0_21 = arith.constant 0 : index
    %37 = vector.load %arg6[%c0_20, %c64, %c0_21] : memref<1x80x512xf32, #tpu.memory_space<vmem>>, vector<1x16x512xf32>
    %38 = vector.shape_cast %37 : vector<1x16x512xf32> to vector<16x512xf32>
    %39 = vector.shape_cast %36 : vector<16x512xf32> to vector<1x16x512xf32>
    tpu.vector_store %arg6[%c0_20, %c64, %c0_21], %39 {strides = array<i32>} : memref<1x80x512xf32, #tpu.memory_space<vmem>>, vector<1x16x512xf32>,
    return
  }
  func.func @transform_0(%arg0: i32, %arg1: i32) -> (i32, i32, i32) {
    %c0_i32 = arith.constant 0 : i32
    %c0_i32_0 = arith.constant 0 : i32
    return %arg0, %c0_i32, %arg1 : i32, i32, i32
  }
  func.func @transform_1(%arg0: i32, %arg1: i32) -> (i32, i32, i32) {
    %c0_i32 = arith.constant 0 : i32
    %c0_i32_0 = arith.constant 0 : i32
    return %arg0, %c0_i32, %arg1 : i32, i32, i32
  }
  func.func @transform_2(%arg0: i32, %arg1: i32) -> (i32, i32) {
    %c0_i32 = arith.constant 0 : i32
    %c0_i32_0 = arith.constant 0 : i32
    %c0_i32_1 = arith.constant 0 : i32
    return %c0_i32, %c0_i32_0 : i32, i32
  }
  func.func @transform_3(%arg0: i32, %arg1: i32) -> (i32, i32) {
    %c0_i32 = arith.constant 0 : i32
    %c0_i32_0 = arith.constant 0 : i32
    %c0_i32_1 = arith.constant 0 : i32
    return %c0_i32, %c0_i32_0 : i32, i32
  }
  func.func @transform_4(%arg0: i32, %arg1: i32) -> (i32, i32, i32) {
    %c0_i32 = arith.constant 0 : i32
    %c0_i32_0 = arith.constant 0 : i32
    return %arg0, %c0_i32, %arg1 : i32, i32, i32
  }
}

</mosaic_0001>

<llo_original>
// kernel: pose_geo.1
$region0: #{pose_geo.1}
  #allocation0 [shape = 'u32[]', space=smem, size = 0x4, offset = 0x4, fixed_abs, tag = 'smem constant byte address 0x4 - core index']
  #allocation1 [shape = 'u32[144,128]{1,0:T(1,128)}', space=vmem, size = 0x12000, scoped, tag = 'internal scratch']
  %s0 = inlined_call_operand.vmem [shape: f32[2,3,512], index: 0, kind: input, shape index: {}]
  %s1 = inlined_call_operand.vmem [shape: f32[2,32,512], index: 1, kind: input, shape index: {}]
  %s2 = inlined_call_operand.vmem [shape: f32[16,1], index: 2, kind: input, shape index: {}]
  %s3 = inlined_call_operand.vmem [shape: f32[16,1], index: 3, kind: input, shape index: {}]
  %s4 = inlined_call_operand.vmem [shape: f32[2,80,512], index: 4, kind: output, shape index: {}]
  %s5 = sld [smem:[#allocation0]]
  $region49: #{pose_geo.1} parent=0
    _
  %s7 = ssub.s32 1, %s5
  %s8 = scalar_select 0, %s7, %s5
  loop: start=0, step=1, limit=4
  $region2: #{pose_geo.1} parent=0 // loop_pre_header
    _
  $region3: #{pose_geo.1} parent=0 // loop_header
    %s10 = sphi 0, %s14
    %p11 = scmp.ge.s32.totalorder %s10, 4
    %s17 = sphi 0, %s29
    %s18 = sphi 0, %s25
    %s19 = sphi 0, %s17
    %s20 = sphi 0, %s18
    %s21 = sphi 0, %s19
    %s22 = sphi 0, %s20
    %s34 = sphi 0, %s36
    %s37 = sphi 0, %s34
    %s38 = sphi 0, %s37
    %s54 = sphi 0, %s38
    %s62 = sphi 0, %s64
    %s65 = sphi 0, %s62
    %s66 = sphi 0, %s65
    %s82 = sphi 0, %s66
    %s86 = sphi 0, %s86
    %s88 = sphi 0, %s86
    %s89 = sphi 0, %s88
    %s103 = sphi 0, %s89
    %s107 = sphi 0, %s107
    %s109 = sphi 0, %s107
    %s110 = sphi 0, %s109
    %s124 = sphi 0, %s110
    %s132 = sphi 0, %s134
    %s135 = sphi 0, %s132
    %s136 = sphi 0, %s135
    %s152 = sphi 0, %s136
  $region4: #{pose_geo.1} parent=0 // loop_header_branch
    %13 = sbr.rel (%p11) target = $region8
  $region5: #{pose_geo.1} parent=0 // loop_body
    %s15 = ssub.s32 %s10, 1
    %s16 = ssub.s32 %s10, 2
    %s23 = sadd.s32 1, %s18
    %p24 = scmp.ge.s32.totalorder %s23, 1
    %s25 = scalar_select %p24, 0, %s23
    %s26 = sadd.s32 1, %s17
    %s27 = scalar_select %p24, %s26, %s17
    %p28 = scmp.ge.s32.totalorder %s27, 2
    %s29 = scalar_select %p28, 0, %s27
    %s30 = ssub.s32 %s17, %s29
    %s31 = ssub.s32 %s18, %s25
    %s32 = sor.u32 %s30, %s31
    %p33 = scmp.eq.s32.totalorder %s32, 0
    %s35 = sadd.s32 %s34, 1
    %s36 = scalar_select %p33, %s34, %s35
    %p39 = pneg %p33
    %p40 = scmp.eq.s32.totalorder %s10, 1
    %p41 = por %p39, %p40
    %p42 = scmp.ne.s32.totalorder %s34, %s37
    %p43 = scmp.eq.s32.totalorder %s10, 0
    %p44 = por %p42, %p43
    %p45 = scmp.ne.s32.totalorder %s34, %s37
    %p46 = scmp.eq.s32.totalorder %s15, 1
    %p47 = por %p45, %p46
    %p48 = scmp.ne.s32.totalorder %s37, %s38
    %p49 = scmp.eq.s32.totalorder %s15, 0
    %p50 = por %p48, %p49
    %p51 = scmp.ne.s32.totalorder %s37, %s38
    %p52 = scmp.eq.s32.totalorder %s16, 1
    %p53 = por %p51, %p52
    %p55 = scmp.ne.s32.totalorder %s38, %s54
    %p56 = scmp.eq.s32.totalorder %s16, 0
    %p57 = por %p55, %p56
    %s58 = ssub.s32 %s17, %s29
    %s59 = ssub.s32 %s18, %s25
    %s60 = sor.u32 %s58, %s59
    %p61 = scmp.eq.s32.totalorder %s60, 0
    %s63 = sadd.s32 %s62, 1
    %s64 = scalar_select %p61, %s62, %s63
    %p67 = pneg %p61
    %p68 = scmp.eq.s32.totalorder %s10, 1
    %p69 = por %p67, %p68
    %p70 = scmp.ne.s32.totalorder %s62, %s65
    %p71 = scmp.eq.s32.totalorder %s10, 0
    %p72 = por %p70, %p71
    %p73 = scmp.ne.s32.totalorder %s62, %s65
    %p74 = scmp.eq.s32.totalorder %s15, 1
    %p75 = por %p73, %p74
    %p76 = scmp.ne.s32.totalorder %s65, %s66
    %p77 = scmp.eq.s32.totalorder %s15, 0
    %p78 = por %p76, %p77
    %p79 = scmp.ne.s32.totalorder %s65, %s66
    %p80 = scmp.eq.s32.totalorder %s16, 1
    %p81 = por %p79, %p80
    %p83 = scmp.ne.s32.totalorder %s66, %s82
    %p84 = scmp.eq.s32.totalorder %s16, 0
    %p85 = por %p83, %p84
    %s87 = sadd.s32 %s86, 1
    %p90 = scmp.eq.s32.totalorder %s10, 1
    %p91 = scmp.ne.s32.totalorder %s86, %s88
    %p92 = scmp.eq.s32.totalorder %s10, 0
    %p93 = por %p91, %p92
    %p94 = scmp.ne.s32.totalorder %s86, %s88
    %p95 = scmp.eq.s32.totalorder %s15, 1
    %p96 = por %p94, %p95
    %p97 = scmp.ne.s32.totalorder %s88, %s89
    %p98 = scmp.eq.s32.totalorder %s15, 0
    %p99 = por %p97, %p98
    %p100 = scmp.ne.s32.totalorder %s88, %s89
    %p101 = scmp.eq.s32.totalorder %s16, 1
    %p102 = por %p100, %p101
    %p104 = scmp.ne.s32.totalorder %s89, %s103
    %p105 = scmp.eq.s32.totalorder %s16, 0
    %p106 = por %p104, %p105
    %s108 = sadd.s32 %s107, 1
    %p111 = scmp.eq.s32.totalorder %s10, 1
    %p112 = scmp.ne.s32.totalorder %s107, %s109
    %p113 = scmp.eq.s32.totalorder %s10, 0
    %p114 = por %p112, %p113
    %p115 = scmp.ne.s32.totalorder %s107, %s109
    %p116 = scmp.eq.s32.totalorder %s15, 1
    %p117 = por %p115, %p116
    %p118 = scmp.ne.s32.totalorder %s109, %s110
    %p119 = scmp.eq.s32.totalorder %s15, 0
    %p120 = por %p118, %p119
    %p121 = scmp.ne.s32.totalorder %s109, %s110
    %p122 = scmp.eq.s32.totalorder %s16, 1
    %p123 = por %p121, %p122
    %p125 = scmp.ne.s32.totalorder %s110, %s124
    %p126 = scmp.eq.s32.totalorder %s16, 0
    %p127 = por %p125, %p126
    %s128 = ssub.s32 %s17, %s29
    %s129 = ssub.s32 %s18, %s25
    %s130 = sor.u32 %s128, %s129
    %p131 = scmp.eq.s32.totalorder %s130, 0
    %s133 = sadd.s32 %s132, 1
    %s134 = scalar_select %p131, %s132, %s133
    %p137 = pneg %p131
    %p138 = scmp.eq.s32.totalorder %s10, 1
    %p139 = por %p137, %p138
    %p140 = scmp.ne.s32.totalorder %s132, %s135
    %p141 = scmp.eq.s32.totalorder %s10, 0
    %p142 = por %p140, %p141
    %p143 = scmp.ne.s32.totalorder %s132, %s135
    %p144 = scmp.eq.s32.totalorder %s15, 1
    %p145 = por %p143, %p144
    %p146 = scmp.ne.s32.totalorder %s135, %s136
    %p147 = scmp.eq.s32.totalorder %s15, 0
    %p148 = por %p146, %p147
    %p149 = scmp.ne.s32.totalorder %s135, %s136
    %p150 = scmp.eq.s32.totalorder %s16, 1
    %p151 = por %p149, %p150
    %p153 = scmp.ne.s32.totalorder %s136, %s152
    %p154 = scmp.eq.s32.totalorder %s16, 0
    %p155 = por %p153, %p154
    %p156 = scmp.le.s32.totalorder 1, %s10
    %p157 = scmp.lt.s32.totalorder %s10, 3
    %p158 = pnand %p156, %p157
    %p159 = pneg %p158
    // Predicated region
    $region9: #{pose_geo.1} parent=5 // pred_check
      _
    $region10: #{pose_geo.1} parent=5 // pred_check_branch
      %161 = sbr.rel (%p158) target = $region12
    $region11: #{pose_geo.1} parent=5 // pred_region
      %s162 = ssub.s32 %s10, 1
      // Predicated region
      $region13: #{pose_geo.1} parent=11 // pred_check
        %p163 = pneg %p99
      $region14: #{pose_geo.1} parent=11 // pred_check_branch
        %165 = sbr.rel (%p163) target = $region16
      $region15: #{pose_geo.1} parent=11 // pred_region
        _
      $region16: #{pose_geo.1} parent=11 // pred_fallthru
        _
      // Predicated region
      $region17: #{pose_geo.1} parent=11 // pred_check
        %p166 = pneg %p120
      $region18: #{pose_geo.1} parent=11 // pred_check_branch
        %168 = sbr.rel (%p166) target = $region20
      $region19: #{pose_geo.1} parent=11 // pred_region
        _
      $region20: #{pose_geo.1} parent=11 // pred_fallthru
        _
    $region12: #{pose_geo.1} parent=5 // pred_fallthru
      _
    %p169 = scmp.lt.s32.totalorder %s10, 2
    // Predicated region
    $region21: #{pose_geo.1} parent=5 // pred_check
      %p170 = pneg %p169
    $region22: #{pose_geo.1} parent=5 // pred_check_branch
      %172 = sbr.rel (%p170) target = $region24
    $region23: #{pose_geo.1} parent=5 // pred_region
      // Predicated region
      $region25: #{pose_geo.1} parent=23 // pred_check
        %p173 = pneg %p44
      $region26: #{pose_geo.1} parent=23 // pred_check_branch
        %175 = sbr.rel (%p173) target = $region28
      $region27: #{pose_geo.1} parent=23 // pred_region
        %s176 = smul.u32 4, %s18
        %p177 = scmp.lt.s32.totalorder %s17, 1
        %s178 = scalar_select %p177, %s17, 1
        %p179 = scmp.lt.s32.totalorder %s176, 3
        %s180 = scalar_select %p179, %s176, 3
        %s181 = smul.addr %s178, 4
        %s182 = sadd.s32 %s180, %s181
        %s183 = smul.addr %s182, 4
        %s184 = scalar_lea.vmem %s0, %s183
        %s185 = smul.u32 4, %s18
      $region28: #{pose_geo.1} parent=23 // pred_fallthru
        _
      // Predicated region
      $region29: #{pose_geo.1} parent=23 // pred_check
        %p186 = pneg %p72
      $region30: #{pose_geo.1} parent=23 // pred_check_branch
        %188 = sbr.rel (%p186) target = $region32
      $region31: #{pose_geo.1} parent=23 // pred_region
        %s189 = smul.u32 4, %s18
        %p190 = scmp.lt.s32.totalorder %s17, 1
        %s191 = scalar_select %p190, %s17, 1
        %p192 = scmp.lt.s32.totalorder %s189, 3
        %s193 = scalar_select %p192, %s189, 3
        %s194 = smul.addr %s191, 16
        %s195 = sadd.s32 %s193, %s194
        %s196 = smul.addr %s195, 8
        %s197 = scalar_lea.vmem %s1, %s196
        %s198 = smul.u32 4, %s18
      $region32: #{pose_geo.1} parent=23 // pred_fallthru
        _
    $region24: #{pose_geo.1} parent=5 // pred_fallthru
      _
    %p199 = scmp.le.s32.totalorder 1, %s10
    %p200 = scmp.lt.s32.totalorder %s10, 3
    %p201 = pnand %p199, %p200
    %p202 = pneg %p201
    // Predicated region
    $region33: #{pose_geo.1} parent=5 // pred_check
      _
    $region34: #{pose_geo.1} parent=5 // pred_check_branch
      %204 = sbr.rel (%p201) target = $region36
    $region35: #{pose_geo.1} parent=5 // pred_region
      %s205 = ssub.s32 %s10, 1
      %s206 = smul.u32 4, %s20
      %p207 = scmp.lt.s32.totalorder %s19, 1
      %s208 = scalar_select %p207, %s19, 1
      %p209 = scmp.lt.s32.totalorder %s206, 3
      %s210 = scalar_select %p209, %s206, 3
      %s211 = smul.addr %s208, 4
      %s212 = sadd.s32 %s210, %s211
      %s213 = smul.addr %s212, 4
      %s214 = scalar_lea.vmem %s0, %s213
      %p215 = pneg %p50
      %p216 = pneg %p47
      %s217 = smul.u32 4, %s20
      %p218 = scmp.lt.s32.totalorder %s19, 1
      %s219 = scalar_select %p218, %s19, 1
      %p220 = scmp.lt.s32.totalorder %s217, 3
      %s221 = scalar_select %p220, %s217, 3
      %s222 = smul.addr %s219, 16
      %s223 = sadd.s32 %s221, %s222
      %s224 = smul.addr %s223, 8
      %s225 = scalar_lea.vmem %s1, %s224
      %p226 = pneg %p78
      %p227 = pneg %p75
      %p228 = pneg %p99
      %p229 = pneg %p96
      %p230 = pneg %p120
      %p231 = pneg %p117
      %p232 = pneg %p148
      %p233 = pneg %p145
      %s234 = smul.u32 4, %s20
      %p235 = scmp.lt.s32.totalorder %s19, 1
      %s236 = scalar_select %p235, %s19, 1
      %p237 = scmp.lt.s32.totalorder %s234, 3
      %s238 = scalar_select %p237, %s234, 3
      %s239 = smul.addr %s236, 40
      %s240 = sadd.s32 %s238, %s239
      %s241 = smul.addr %s240, 8
      %s242 = scalar_lea.vmem %s4, %s241
      %s243 = smul.u32 4, %s20
      %p244 = scmp.lt.s32.totalorder %s19, 1
      %s245 = scalar_select %p244, %s19, 1
      %p246 = scmp.lt.s32.totalorder %s243, 3
      %s247 = scalar_select %p246, %s243, 3
      %s248 = smul.addr %s245, 4
      %s249 = sadd.s32 %s247, %s248
      %s250 = smul.addr %s249, 4
      %s251 = scalar_lea.vmem %s0, %s250
      %s252 = smul.u32 4, %s20
      %s253 = smul.u32 4, %s20
      %p254 = scmp.lt.s32.totalorder %s19, 1
      %s255 = scalar_select %p254, %s19, 1
      %p256 = scmp.lt.s32.totalorder %s253, 3
      %s257 = scalar_select %p256, %s253, 3
      %s258 = smul.addr %s255, 16
      %s259 = sadd.s32 %s257, %s258
      %s260 = smul.addr %s259, 8
      %s261 = scalar_lea.vmem %s1, %s260
      %s262 = smul.u32 4, %s20
      %s263 = smul.u32 4, %s20
      %p264 = scmp.lt.s32.totalorder %s19, 1
      %s265 = scalar_select %p264, %s19, 1
      %p266 = scmp.lt.s32.totalorder %s263, 3
      %s267 = scalar_select %p266, %s263, 3
      %s268 = smul.addr %s265, 40
      %s269 = sadd.s32 %s267, %s268
      %s270 = smul.addr %s269, 8
      %s271 = scalar_lea.vmem %s4, %s270
      %s272 = smul.u32 4, %s20
      %v273 = vld [vmem:[%s261] sm:$0xff]
      %v274 = vld [vmem:[%s261 + $0x8] sm:$0xff]
      %v275 = vld [vmem:[%s261 + $0x10] sm:$0xff]
      %v276 = vld [vmem:[%s261 + $0x18] sm:$0xff]
      %v277 = vld [vmem:[%s261 + $0x20] sm:$0xff]
      %v278 = vld [vmem:[%s261 + $0x28] sm:$0xff]
      %v279 = vld [vmem:[%s261 + $0x30] sm:$0xff]
      %v280 = vld [vmem:[%s261 + $0x38] sm:$0xff]
      %v281 = vld [vmem:[%s261 + $0x40] sm:$0xff]
      %v282 = vld [vmem:[%s261 + $0x48] sm:$0xff]
      %v283 = vld [vmem:[%s261 + $0x50] sm:$0xff]
      %v284 = vld [vmem:[%s261 + $0x58] sm:$0xff]
      %v285 = vld [vmem:[%s261 + $0x60] sm:$0xff]
      %v286 = vld [vmem:[%s261 + $0x68] sm:$0xff]
      %v287 = vld [vmem:[%s261 + $0x70] sm:$0xff]
      %v288 = vld [vmem:[%s261 + $0x78] sm:$0xff]
      %289 = vst [vmem:[%s271] sm:$0xff] %v273
      %290 = vst [vmem:[%s271 + $0x8] sm:$0xff] %v274
      %291 = vst [vmem:[%s271 + $0x10] sm:$0xff] %v275
      %292 = vst [vmem:[%s271 + $0x18] sm:$0xff] %v276
      %293 = vst [vmem:[%s271 + $0x20] sm:$0xff] %v277
      %294 = vst [vmem:[%s271 + $0x28] sm:$0xff] %v278
      %295 = vst [vmem:[%s271 + $0x30] sm:$0xff] %v279
      %296 = vst [vmem:[%s271 + $0x38] sm:$0xff] %v280
      %297 = vst [vmem:[%s271 + $0x40] sm:$0xff] %v281
      %298 = vst [vmem:[%s271 + $0x48] sm:$0xff] %v282
      %299 = vst [vmem:[%s271 + $0x50] sm:$0xff] %v283
      %300 = vst [vmem:[%s271 + $0x58] sm:$0xff] %v284
      %301 = vst [vmem:[%s271 + $0x60] sm:$0xff] %v285
      %302 = vst [vmem:[%s271 + $0x68] sm:$0xff] %v286
      %303 = vst [vmem:[%s271 + $0x70] sm:$0xff] %v287
      %304 = vst [vmem:[%s271 + $0x78] sm:$0xff] %v288
      %v305 = vld [vmem:[%s2] sm:$0xff]
      %v306 = vld [vmem:[%s2 + $0x8] sm:$0xff]
      %v307 = vld [vmem:[%s3] sm:$0xff]
      %v308 = vld [vmem:[%s3 + $0x8] sm:$0xff]
      %v309 = vld [vmem:[%s251] ss:$4 sm:$0xf]
      %v311 = vlaneseq
      %v312 = vshrl.u32 %v311, 7
      %v313 = vsub.s32 0, %v312
      %v314 = vrot.slane %v309, %v313
      %v315 = vlaneseq
      %v316 = vshrl.u32 %v315, 7
      %v317 = vsub.s32 1, %v316
      %v318 = vrot.slane %v309, %v317
      %v319 = vlaneseq
      %v320 = vshrl.u32 %v319, 7
      %v321 = vsub.s32 2, %v320
      %v322 = vrot.slane %v309, %v321
      %v323 = vlaneseq
      %v324 = vshrl.u32 %v323, 7
      %v325 = vsub.s32 3, %v324
      %v326 = vrot.slane %v309, %v325
      %332 = vset.pattern.permute.xlu0 0
      %333 = vperm.xlu0 %332, %v305
      %v334 = vpop.permute.xlu0 %333
      %337 = vset.pattern.permute.xlu0 0
      %338 = vperm.xlu0 %337, %v306
      %v339 = vpop.permute.xlu0 %338
      %v341 = vmul.f32 %v314, %v334
      %v342 = vmul.f32 %v318, %v334
      %v343 = vmul.f32 %v322, %v334
      %v344 = vmul.f32 %v326, %v334
      %v345 = vmul.f32 %v314, %v339
      %v346 = vmul.f32 %v318, %v339
      %v347 = vmul.f32 %v322, %v339
      %v348 = vmul.f32 %v326, %v339
      %350 = vset.pattern.permute.xlu0 0
      %351 = vperm.xlu0 %350, %v307
      %v352 = vpop.permute.xlu0 %351
      %355 = vset.pattern.permute.xlu0 0
      %356 = vperm.xlu0 %355, %v308
      %v357 = vpop.permute.xlu0 %356
      %v359 = vadd.f32 %v341, %v352
      %v360 = vadd.f32 %v342, %v352
      %v361 = vadd.f32 %v343, %v352
      %v362 = vadd.f32 %v344, %v352
      %v363 = vadd.f32 %v345, %v357
      %v364 = vadd.f32 %v346, %v357
      %v365 = vadd.f32 %v347, %v357
      %v366 = vadd.f32 %v348, %v357
      %v367 = vand.u32 2147483647, %v359
      %vm368 = vcmp.le.f32.partialorder %v367, 0.7853982
      %vm369 = vcmp.lt.s32.totalorder %v359, 0
      %v370 = vand.u32 %v359, 2139095040
      %v371 = vshrl.u32 %v370, 23
      %v372 = vsub.s32 %v371, 127
      %v373 = vand.u32 2147483647, %v359
      %v374 = vand.u32 %v373, 8388607
      %v375 = vor.u32 %v374, 8388608
      %v376 = vsub.s32 0, %v375
      %v377 = vadd.s32 %v372, 1
      %vm378 = vcmp.gt.s32.totalorder %v377, 0
      %v379 = vsel %vm378, %v377, 0
      %v380 = vshrl.u32 %v379, 5
      %v381 = vand.u32 %v379, 31
      %v382 = vsub.s32 32, %v381
      %v383 = vshrl.u32 683565275, %v382
      %v384 = vshll.u32 683565275, %v381
      %v385 = vshrl.u32 2475754826, %v382
      %v386 = vor.u32 %v384, %v385
      %v387 = vshll.u32 2475754826, %v381
      %v388 = vshrl.u32 2131351028, %v382
      %v389 = vor.u32 %v387, %v388
      %v390 = vshll.u32 2131351028, %v381
      %v391 = vshrl.u32 2102212464, %v382
      %v392 = vor.u32 %v390, %v391
      %v393 = vshll.u32 2102212464, %v381
      %v394 = vshrl.u32 920167782, %v382
      %v395 = vor.u32 %v393, %v394
      %v396 = vshll.u32 920167782, %v381
      %v397 = vshrl.u32 1326507024, %v382
      %v398 = vor.u32 %v396, %v397
      %vm399 = vcmp.lt.s32.totalorder %v380, 1
      %vm400 = vcmp.lt.s32.totalorder %v380, 2
      %vm401 = vcmp.lt.s32.totalorder %v380, 3
      %vm402 = vcmp.lt.s32.totalorder %v380, 4
      %v403 = vsel %vm399, %v383, %v386
      %v404 = vsel %vm402, %v392, 2102212464
      %v405 = vsel %vm401, %v389, %v404
      %v406 = vsel %vm400, %v403, %v405
      %v407 = vsel %vm399, %v386, %v389
      %v408 = vsel %vm402, %v395, 920167782
      %v409 = vsel %vm401, %v392, %v408
      %v410 = vsel %vm400, %v407, %v409
      %v411 = vsel %vm399, %v389, %v392
      %v412 = vsel %vm402, %v398, 1326507024
      %v413 = vsel %vm401, %v395, %v412
      %v414 = vsel %vm400, %v411, %v413
      %v415 = vshll.u32 %v375, 8
      %v416 = vmul.u32.u64.compose %v415, %v414
      %v417 = vextract.low.u32 %v416
      %v418 = vextract.high.u32 %v416
      %v419 = vmul.u32.u64.compose %v415, %v410
      %v420 = vextract.low.u32 %v419
      %v421 = vextract.high.u32 %v419
      %v422 = vmul.u32 %v415, %v406
      %v423 = vadd.s32 %v418, %v420
      %vm424 = vc.u32 %v418, %v420
      %v425 = vadd.s32 %v421, 1
      %v426 = vsel %vm424, %v425, %v421
      %v427 = vadd.s32 %v422, %v426
      %v428 = vadd.s32 %v427, 536870912
      %v429 = vshrl.u32 %v428, 30
      %v430 = vshll.u32 %v429, 30
      %v431 = vsub.s32 %v427, %v430
      %vm432 = vcmp.lt.s32.totalorder %v431, 0
      %v433 = vsub.s32 0, %v431
      %v434 = vsel %vm432, %v433, %v431
      %v435 = vclz %v434
      %v436 = vsub.s32 %v435, 2
      %vm437 = vcmp.gt.s32.totalorder 0, %v436
      %v438 = vsel %vm437, 0, %v436
      %v439 = vsub.s32 32, %v438
      %v440 = vshll.u32 %v431, %v438
      %v441 = vshrl.u32 %v423, %v439
      %v442 = vor.u32 %v440, %v441
      %v443 = vsub.s32 4294967266, %v438
      %v444 = vadd.s32 %v443, 127
      %v445 = vshll.u32 %v444, 23
      %v446 = vor.u32 4788187, %v445
      %v447 = vand.u32 2147483647, %v446
      %v449 = vcvt.s32.f32 %v442
      %v450 = vmul.f32 %v449, %v447
      %v451 = vxor.u32 %v450, 2147483648
      %v452 = vsel %vm369, %v451, %v450
      %v453 = vsub.s32 4, %v429
      %v454 = vsel %vm369, %v453, %v429
      %v455 = vsel %vm368, %v359, %v452
      %v456 = vsel %vm368, 0, %v454
      %v457 = vcosq.f32.pop %v455
      %v458 = vsinq.f32.pop %v455
      %vm459 = vweird.f32 %v359
      %v460 = vadd.s32 %v456, 3
      %v461 = vand.u32 %v460, 3
      %vm462 = vcmp.lt.s32.totalorder %v461, 2
      %vm463 = vcmp.eq.s32.totalorder %v461, 0
      %v464 = vxor.u32 %v458, 2147483648
      %v465 = vsel %vm463, %v457, %v464
      %vm466 = vcmp.eq.s32.totalorder %v461, 2
      %v467 = vxor.u32 %v457, 2147483648
      %v468 = vsel %vm466, %v467, %v458
      %v469 = vsel %vm462, %v465, %v468
      %v470 = vsel %vm459, nan, %v469
      %v471 = vand.u32 2147483647, %v360
      %vm472 = vcmp.le.f32.partialorder %v471, 0.7853982
      %vm473 = vcmp.lt.s32.totalorder %v360, 0
      %v474 = vand.u32 %v360, 2139095040
      %v475 = vshrl.u32 %v474, 23
      %v476 = vsub.s32 %v475, 127
      %v477 = vand.u32 2147483647, %v360
      %v478 = vand.u32 %v477, 8388607
      %v479 = vor.u32 %v478, 8388608
      %v480 = vsub.s32 0, %v479
      %v481 = vadd.s32 %v476, 1
      %vm482 = vcmp.gt.s32.totalorder %v481, 0
      %v483 = vsel %vm482, %v481, 0
      %v484 = vshrl.u32 %v483, 5
      %v485 = vand.u32 %v483, 31
      %v486 = vsub.s32 32, %v485
      %v487 = vshrl.u32 683565275, %v486
      %v488 = vshll.u32 683565275, %v485
      %v489 = vshrl.u32 2475754826, %v486
      %v490 = vor.u32 %v488, %v489
      %v491 = vshll.u32 2475754826, %v485
      %v492 = vshrl.u32 2131351028, %v486
      %v493 = vor.u32 %v491, %v492
      %v494 = vshll.u32 2131351028, %v485
      %v495 = vshrl.u32 2102212464, %v486
      %v496 = vor.u32 %v494, %v495
      %v497 = vshll.u32 2102212464, %v485
      %v498 = vshrl.u32 920167782, %v486
      %v499 = vor.u32 %v497, %v498
      %v500 = vshll.u32 920167782, %v485
      %v501 = vshrl.u32 1326507024, %v486
      %v502 = vor.u32 %v500, %v501
      %vm503 = vcmp.lt.s32.totalorder %v484, 1
      %vm504 = vcmp.lt.s32.totalorder %v484, 2
      %vm505 = vcmp.lt.s32.totalorder %v484, 3
      %vm506 = vcmp.lt.s32.totalorder %v484, 4
      %v507 = vsel %vm503, %v487, %v490
      %v508 = vsel %vm506, %v496, 2102212464
      %v509 = vsel %vm505, %v493, %v508
      %v510 = vsel %vm504, %v507, %v509
      %v511 = vsel %vm503, %v490, %v493
      %v512 = vsel %vm506, %v499, 920167782
      %v513 = vsel %vm505, %v496, %v512
      %v514 = vsel %vm504, %v511, %v513
      %v515 = vsel %vm503, %v493, %v496
      %v516 = vsel %vm506, %v502, 1326507024
      %v517 = vsel %vm505, %v499, %v516
      %v518 = vsel %vm504, %v515, %v517
      %v519 = vshll.u32 %v479, 8
      %v520 = vmul.u32.u64.compose %v519, %v518
      %v521 = vextract.low.u32 %v520
      %v522 = vextract.high.u32 %v520
      %v523 = vmul.u32.u64.compose %v519, %v514
      %v524 = vextract.low.u32 %v523
      %v525 = vextract.high.u32 %v523
      %v526 = vmul.u32 %v519, %v510
      %v527 = vadd.s32 %v522, %v524
      %vm528 = vc.u32 %v522, %v524
      %v529 = vadd.s32 %v525, 1
      %v530 = vsel %vm528, %v529, %v525
      %v531 = vadd.s32 %v526, %v530
      %v532 = vadd.s32 %v531, 536870912
      %v533 = vshrl.u32 %v532, 30
      %v534 = vshll.u32 %v533, 30
      %v535 = vsub.s32 %v531, %v534
      %vm536 = vcmp.lt.s32.totalorder %v535, 0
      %v537 = vsub.s32 0, %v535
      %v538 = vsel %vm536, %v537, %v535
      %v539 = vclz %v538
      %v540 = vsub.s32 %v539, 2
      %vm541 = vcmp.gt.s32.totalorder 0, %v540
      %v542 = vsel %vm541, 0, %v540
      %v543 = vsub.s32 32, %v542
      %v544 = vshll.u32 %v535, %v542
      %v545 = vshrl.u32 %v527, %v543
      %v546 = vor.u32 %v544, %v545
      %v547 = vsub.s32 4294967266, %v542
      %v548 = vadd.s32 %v547, 127
      %v549 = vshll.u32 %v548, 23
      %v550 = vor.u32 4788187, %v549
      %v551 = vand.u32 2147483647, %v550
      %v553 = vcvt.s32.f32 %v546
      %v554 = vmul.f32 %v553, %v551
      %v555 = vxor.u32 %v554, 2147483648
      %v556 = vsel %vm473, %v555, %v554
      %v557 = vsub.s32 4, %v533
      %v558 = vsel %vm473, %v557, %v533
      %v559 = vsel %vm472, %v360, %v556
      %v560 = vsel %vm472, 0, %v558
      %v561 = vcosq.f32.pop %v559
      %v562 = vsinq.f32.pop %v559
      %vm563 = vweird.f32 %v360
      %v564 = vadd.s32 %v560, 3
      %v565 = vand.u32 %v564, 3
      %vm566 = vcmp.lt.s32.totalorder %v565, 2
      %vm567 = vcmp.eq.s32.totalorder %v565, 0
      %v568 = vxor.u32 %v562, 2147483648
      %v569 = vsel %vm567, %v561, %v568
      %vm570 = vcmp.eq.s32.totalorder %v565, 2
      %v571 = vxor.u32 %v561, 2147483648
      %v572 = vsel %vm570, %v571, %v562
      %v573 = vsel %vm566, %v569, %v572
      %v574 = vsel %vm563, nan, %v573
      %v575 = vand.u32 2147483647, %v361
      %vm576 = vcmp.le.f32.partialorder %v575, 0.7853982
      %vm577 = vcmp.lt.s32.totalorder %v361, 0
      %v578 = vand.u32 %v361, 2139095040
      %v579 = vshrl.u32 %v578, 23
      %v580 = vsub.s32 %v579, 127
      %v581 = vand.u32 2147483647, %v361
      %v582 = vand.u32 %v581, 8388607
      %v583 = vor.u32 %v582, 8388608
      %v584 = vsub.s32 0, %v583
      %v585 = vadd.s32 %v580, 1
      %vm586 = vcmp.gt.s32.totalorder %v585, 0
      %v587 = vsel %vm586, %v585, 0
      %v588 = vshrl.u32 %v587, 5
      %v589 = vand.u32 %v587, 31
      %v590 = vsub.s32 32, %v589
      %v591 = vshrl.u32 683565275, %v590
      %v592 = vshll.u32 683565275, %v589
      %v593 = vshrl.u32 2475754826, %v590
      %v594 = vor.u32 %v592, %v593
      %v595 = vshll.u32 2475754826, %v589
      %v596 = vshrl.u32 2131351028, %v590
      %v597 = vor.u32 %v595, %v596
      %v598 = vshll.u32 2131351028, %v589
      %v599 = vshrl.u32 2102212464, %v590
      %v600 = vor.u32 %v598, %v599
      %v601 = vshll.u32 2102212464, %v589
      %v602 = vshrl.u32 920167782, %v590
      %v603 = vor.u32 %v601, %v602
      %v604 = vshll.u32 920167782, %v589
      %v605 = vshrl.u32 1326507024, %v590
      %v606 = vor.u32 %v604, %v605
      %vm607 = vcmp.lt.s32.totalorder %v588, 1
      %vm608 = vcmp.lt.s32.totalorder %v588, 2
      %vm609 = vcmp.lt.s32.totalorder %v588, 3
      %vm610 = vcmp.lt.s32.totalorder %v588, 4
      %v611 = vsel %vm607, %v591, %v594
      %v612 = vsel %vm610, %v600, 2102212464
      %v613 = vsel %vm609, %v597, %v612
      %v614 = vsel %vm608, %v611, %v613
      %v615 = vsel %vm607, %v594, %v597
      %v616 = vsel %vm610, %v603, 920167782
      %v617 = vsel %vm609, %v600, %v616
      %v618 = vsel %vm608, %v615, %v617
      %v619 = vsel %vm607, %v597, %v600
      %v620 = vsel %vm610, %v606, 1326507024
      %v621 = vsel %vm609, %v603, %v620
      %v622 = vsel %vm608, %v619, %v621
      %v623 = vshll.u32 %v583, 8
      %v624 = vmul.u32.u64.compose %v623, %v622
      %v625 = vextract.low.u32 %v624
      %v626 = vextract.high.u32 %v624
      %v627 = vmul.u32.u64.compose %v623, %v618
      %v628 = vextract.low.u32 %v627
      %v629 = vextract.high.u32 %v627
      %v630 = vmul.u32 %v623, %v614
      %v631 = vadd.s32 %v626, %v628
      %vm632 = vc.u32 %v626, %v628
      %v633 = vadd.s32 %v629, 1
      %v634 = vsel %vm632, %v633, %v629
      %v635 = vadd.s32 %v630, %v634
      %v636 = vadd.s32 %v635, 536870912
      %v637 = vshrl.u32 %v636, 30
      %v638 = vshll.u32 %v637, 30
      %v639 = vsub.s32 %v635, %v638
      %vm640 = vcmp.lt.s32.totalorder %v639, 0
      %v641 = vsub.s32 0, %v639
      %v642 = vsel %vm640, %v641, %v639
      %v643 = vclz %v642
      %v644 = vsub.s32 %v643, 2
      %vm645 = vcmp.gt.s32.totalorder 0, %v644
      %v646 = vsel %vm645, 0, %v644
      %v647 = vsub.s32 32, %v646
      %v648 = vshll.u32 %v639, %v646
      %v649 = vshrl.u32 %v631, %v647
      %v650 = vor.u32 %v648, %v649
      %v651 = vsub.s32 4294967266, %v646
      %v652 = vadd.s32 %v651, 127
      %v653 = vshll.u32 %v652, 23
      %v654 = vor.u32 4788187, %v653
      %v655 = vand.u32 2147483647, %v654
      %v657 = vcvt.s32.f32 %v650
      %v658 = vmul.f32 %v657, %v655
      %v659 = vxor.u32 %v658, 2147483648
      %v660 = vsel %vm577, %v659, %v658
      %v661 = vsub.s32 4, %v637
      %v662 = vsel %vm577, %v661, %v637
      %v663 = vsel %vm576, %v361, %v660
      %v664 = vsel %vm576, 0, %v662
      %v665 = vcosq.f32.pop %v663
      %v666 = vsinq.f32.pop %v663
      %vm667 = vweird.f32 %v361
      %v668 = vadd.s32 %v664, 3
      %v669 = vand.u32 %v668, 3
      %vm670 = vcmp.lt.s32.totalorder %v669, 2
      %vm671 = vcmp.eq.s32.totalorder %v669, 0
      %v672 = vxor.u32 %v666, 2147483648
      %v673 = vsel %vm671, %v665, %v672
      %vm674 = vcmp.eq.s32.totalorder %v669, 2
      %v675 = vxor.u32 %v665, 2147483648
      %v676 = vsel %vm674, %v675, %v666
      %v677 = vsel %vm670, %v673, %v676
      %v678 = vsel %vm667, nan, %v677
      %v679 = vand.u32 2147483647, %v362
      %vm680 = vcmp.le.f32.partialorder %v679, 0.7853982
      %vm681 = vcmp.lt.s32.totalorder %v362, 0
      %v682 = vand.u32 %v362, 2139095040
      %v683 = vshrl.u32 %v682, 23
      %v684 = vsub.s32 %v683, 127
      %v685 = vand.u32 2147483647, %v362
      %v686 = vand.u32 %v685, 8388607
      %v687 = vor.u32 %v686, 8388608
      %v688 = vsub.s32 0, %v687
      %v689 = vadd.s32 %v684, 1
      %vm690 = vcmp.gt.s32.totalorder %v689, 0
      %v691 = vsel %vm690, %v689, 0
      %v692 = vshrl.u32 %v691, 5
      %v693 = vand.u32 %v691, 31
      %v694 = vsub.s32 32, %v693
      %v695 = vshrl.u32 683565275, %v694
      %v696 = vshll.u32 683565275, %v693
      %v697 = vshrl.u32 2475754826, %v694
      %v698 = vor.u32 %v696, %v697
      %v699 = vshll.u32 2475754826, %v693
      %v700 = vshrl.u32 2131351028, %v694
      %v701 = vor.u32 %v699, %v700
      %v702 = vshll.u32 2131351028, %v693
      %v703 = vshrl.u32 2102212464, %v694
      %v704 = vor.u32 %v702, %v703
      %v705 = vshll.u32 2102212464, %v693
      %v706 = vshrl.u32 920167782, %v694
      %v707 = vor.u32 %v705, %v706
      %v708 = vshll.u32 920167782, %v693
      %v709 = vshrl.u32 1326507024, %v694
      %v710 = vor.u32 %v708, %v709
      %vm711 = vcmp.lt.s32.totalorder %v692, 1
      %vm712 = vcmp.lt.s32.totalorder %v692, 2
      %vm713 = vcmp.lt.s32.totalorder %v692, 3
      %vm714 = vcmp.lt.s32.totalorder %v692, 4
      %v715 = vsel %vm711, %v695, %v698
      %v716 = vsel %vm714, %v704, 2102212464
      %v717 = vsel %vm713, %v701, %v716
      %v718 = vsel %vm712, %v715, %v717
      %v719 = vsel %vm711, %v698, %v701
      %v720 = vsel %vm714, %v707, 920167782
      %v721 = vsel %vm713, %v704, %v720
      %v722 = vsel %vm712, %v719, %v721
      %v723 = vsel %vm711, %v701, %v704
      %v724 = vsel %vm714, %v710, 1326507024
      %v725 = vsel %vm713, %v707, %v724
      %v726 = vsel %vm712, %v723, %v725
      %v727 = vshll.u32 %v687, 8
      %v728 = vmul.u32.u64.compose %v727, %v726
      %v729 = vextract.low.u32 %v728
      %v730 = vextract.high.u32 %v728
      %v731 = vmul.u32.u64.compose %v727, %v722
      %v732 = vextract.low.u32 %v731
      %v733 = vextract.high.u32 %v731
      %v734 = vmul.u32 %v727, %v718
      %v735 = vadd.s32 %v730, %v732
      %vm736 = vc.u32 %v730, %v732
      %v737 = vadd.s32 %v733, 1
      %v738 = vsel %vm736, %v737, %v733
      %v739 = vadd.s32 %v734, %v738
      %v740 = vadd.s32 %v739, 536870912
      %v741 = vshrl.u32 %v740, 30
      %v742 = vshll.u32 %v741, 30
      %v743 = vsub.s32 %v739, %v742
      %vm744 = vcmp.lt.s32.totalorder %v743, 0
      %v745 = vsub.s32 0, %v743
      %v746 = vsel %vm744, %v745, %v743
      %v747 = vclz %v746
      %v748 = vsub.s32 %v747, 2
      %vm749 = vcmp.gt.s32.totalorder 0, %v748
      %v750 = vsel %vm749, 0, %v748
      %v751 = vsub.s32 32, %v750
      %v752 = vshll.u32 %v743, %v750
      %v753 = vshrl.u32 %v735, %v751
      %v754 = vor.u32 %v752, %v753
      %v755 = vsub.s32 4294967266, %v750
      %v756 = vadd.s32 %v755, 127
      %v757 = vshll.u32 %v756, 23
      %v758 = vor.u32 4788187, %v757
      %v759 = vand.u32 2147483647, %v758
      %v761 = vcvt.s32.f32 %v754
      %v762 = vmul.f32 %v761, %v759
      %v763 = vxor.u32 %v762, 2147483648
      %v764 = vsel %vm681, %v763, %v762
      %v765 = vsub.s32 4, %v741
      %v766 = vsel %vm681, %v765, %v741
      %v767 = vsel %vm680, %v362, %v764
      %v768 = vsel %vm680, 0, %v766
      %v769 = vcosq.f32.pop %v767
      %v770 = vsinq.f32.pop %v767
      %vm771 = vweird.f32 %v362
      %v772 = vadd.s32 %v768, 3
      %v773 = vand.u32 %v772, 3
      %vm774 = vcmp.lt.s32.totalorder %v773, 2
      %vm775 = vcmp.eq.s32.totalorder %v773, 0
      %v776 = vxor.u32 %v770, 2147483648
      %v777 = vsel %vm775, %v769, %v776
      %vm778 = vcmp.eq.s32.totalorder %v773, 2
      %v779 = vxor.u32 %v769, 2147483648
      %v780 = vsel %vm778, %v779, %v770
      %v781 = vsel %vm774, %v777, %v780
      %v782 = vsel %vm771, nan, %v781
      %v783 = vand.u32 2147483647, %v363
      %vm784 = vcmp.le.f32.partialorder %v783, 0.7853982
      %vm785 = vcmp.lt.s32.totalorder %v363, 0
      %v786 = vand.u32 %v363, 2139095040
      %v787 = vshrl.u32 %v786, 23
      %v788 = vsub.s32 %v787, 127
      %v789 = vand.u32 2147483647, %v363
      %v790 = vand.u32 %v789, 8388607
      %v791 = vor.u32 %v790, 8388608
      %v792 = vsub.s32 0, %v791
      %v793 = vadd.s32 %v788, 1
      %vm794 = vcmp.gt.s32.totalorder %v793, 0
      %v795 = vsel %vm794, %v793, 0
      %v796 = vshrl.u32 %v795, 5
      %v797 = vand.u32 %v795, 31
      %v798 = vsub.s32 32, %v797
      %v799 = vshrl.u32 683565275, %v798
      %v800 = vshll.u32 683565275, %v797
      %v801 = vshrl.u32 2475754826, %v798
      %v802 = vor.u32 %v800, %v801
      %v803 = vshll.u32 2475754826, %v797
      %v804 = vshrl.u32 2131351028, %v798
      %v805 = vor.u32 %v803, %v804
      %v806 = vshll.u32 2131351028, %v797
      %v807 = vshrl.u32 2102212464, %v798
      %v808 = vor.u32 %v806, %v807
      %v809 = vshll.u32 2102212464, %v797
      %v810 = vshrl.u32 920167782, %v798
      %v811 = vor.u32 %v809, %v810
      %v812 = vshll.u32 920167782, %v797
      %v813 = vshrl.u32 1326507024, %v798
      %v814 = vor.u32 %v812, %v813
      %vm815 = vcmp.lt.s32.totalorder %v796, 1
      %vm816 = vcmp.lt.s32.totalorder %v796, 2
      %vm817 = vcmp.lt.s32.totalorder %v796, 3
      %vm818 = vcmp.lt.s32.totalorder %v796, 4
      %v819 = vsel %vm815, %v799, %v802
      %v820 = vsel %vm818, %v808, 2102212464
      %v821 = vsel %vm817, %v805, %v820
      %v822 = vsel %vm816, %v819, %v821
      %v823 = vsel %vm815, %v802, %v805
      %v824 = vsel %vm818, %v811, 920167782
      %v825 = vsel %vm817, %v808, %v824
      %v826 = vsel %vm816, %v823, %v825
      %v827 = vsel %vm815, %v805, %v808
      %v828 = vsel %vm818, %v814, 1326507024
      %v829 = vsel %vm817, %v811, %v828
      %v830 = vsel %vm816, %v827, %v829
      %v831 = vshll.u32 %v791, 8
      %v832 = vmul.u32.u64.compose %v831, %v830
      %v833 = vextract.low.u32 %v832
      %v834 = vextract.high.u32 %v832
      %v835 = vmul.u32.u64.compose %v831, %v826
      %v836 = vextract.low.u32 %v835
      %v837 = vextract.high.u32 %v835
      %v838 = vmul.u32 %v831, %v822
      %v839 = vadd.s32 %v834, %v836
      %vm840 = vc.u32 %v834, %v836
      %v841 = vadd.s32 %v837, 1
      %v842 = vsel %vm840, %v841, %v837
      %v843 = vadd.s32 %v838, %v842
      %v844 = vadd.s32 %v843, 536870912
      %v845 = vshrl.u32 %v844, 30
      %v846 = vshll.u32 %v845, 30
      %v847 = vsub.s32 %v843, %v846
      %vm848 = vcmp.lt.s32.totalorder %v847, 0
      %v849 = vsub.s32 0, %v847
      %v850 = vsel %vm848, %v849, %v847
      %v851 = vclz %v850
      %v852 = vsub.s32 %v851, 2
      %vm853 = vcmp.gt.s32.totalorder 0, %v852
      %v854 = vsel %vm853, 0, %v852
      %v855 = vsub.s32 32, %v854
      %v856 = vshll.u32 %v847, %v854
      %v857 = vshrl.u32 %v839, %v855
      %v858 = vor.u32 %v856, %v857
      %v859 = vsub.s32 4294967266, %v854
      %v860 = vadd.s32 %v859, 127
      %v861 = vshll.u32 %v860, 23
      %v862 = vor.u32 4788187, %v861
      %v863 = vand.u32 2147483647, %v862
      %v865 = vcvt.s32.f32 %v858
      %v866 = vmul.f32 %v865, %v863
      %v867 = vxor.u32 %v866, 2147483648
      %v868 = vsel %vm785, %v867, %v866
      %v869 = vsub.s32 4, %v845
      %v870 = vsel %vm785, %v869, %v845
      %v871 = vsel %vm784, %v363, %v868
      %v872 = vsel %vm784, 0, %v870
      %v873 = vcosq.f32.pop %v871
      %v874 = vsinq.f32.pop %v871
      %vm875 = vweird.f32 %v363
      %v876 = vadd.s32 %v872, 3
      %v877 = vand.u32 %v876, 3
      %vm878 = vcmp.lt.s32.totalorder %v877, 2
      %vm879 = vcmp.eq.s32.totalorder %v877, 0
      %v880 = vxor.u32 %v874, 2147483648
      %v881 = vsel %vm879, %v873, %v880
      %vm882 = vcmp.eq.s32.totalorder %v877, 2
      %v883 = vxor.u32 %v873, 2147483648
      %v884 = vsel %vm882, %v883, %v874
      %v885 = vsel %vm878, %v881, %v884
      %v886 = vsel %vm875, nan, %v885
      %v887 = vand.u32 2147483647, %v364
      %vm888 = vcmp.le.f32.partialorder %v887, 0.7853982
      %vm889 = vcmp.lt.s32.totalorder %v364, 0
      %v890 = vand.u32 %v364, 2139095040
      %v891 = vshrl.u32 %v890, 23
      %v892 = vsub.s32 %v891, 127
      %v893 = vand.u32 2147483647, %v364
      %v894 = vand.u32 %v893, 8388607
      %v895 = vor.u32 %v894, 8388608
      %v896 = vsub.s32 0, %v895
      %v897 = vadd.s32 %v892, 1
      %vm898 = vcmp.gt.s32.totalorder %v897, 0
      %v899 = vsel %vm898, %v897, 0
      %v900 = vshrl.u32 %v899, 5
      %v901 = vand.u32 %v899, 31
      %v902 = vsub.s32 32, %v901
      %v903 = vshrl.u32 683565275, %v902
      %v904 = vshll.u32 683565275, %v901
      %v905 = vshrl.u32 2475754826, %v902
      %v906 = vor.u32 %v904, %v905
      %v907 = vshll.u32 2475754826, %v901
      %v908 = vshrl.u32 2131351028, %v902
      %v909 = vor.u32 %v907, %v908
      %v910 = vshll.u32 2131351028, %v901
      %v911 = vshrl.u32 2102212464, %v902
      %v912 = vor.u32 %v910, %v911
      %v913 = vshll.u32 2102212464, %v901
      %v914 = vshrl.u32 920167782, %v902
      %v915 = vor.u32 %v913, %v914
      %v916 = vshll.u32 920167782, %v901
      %v917 = vshrl.u32 1326507024, %v902
      %v918 = vor.u32 %v916, %v917
      %vm919 = vcmp.lt.s32.totalorder %v900, 1
      %vm920 = vcmp.lt.s32.totalorder %v900, 2
      %vm921 = vcmp.lt.s32.totalorder %v900, 3
      %vm922 = vcmp.lt.s32.totalorder %v900, 4
      %v923 = vsel %vm919, %v903, %v906
      %v924 = vsel %vm922, %v912, 2102212464
      %v925 = vsel %vm921, %v909, %v924
      %v926 = vsel %vm920, %v923, %v925
      %v927 = vsel %vm919, %v906, %v909
      %v928 = vsel %vm922, %v915, 920167782
      %v929 = vsel %vm921, %v912, %v928
      %v930 = vsel %vm920, %v927, %v929
      %v931 = vsel %vm919, %v909, %v912
      %v932 = vsel %vm922, %v918, 1326507024
      %v933 = vsel %vm921, %v915, %v932
      %v934 = vsel %vm920, %v931, %v933
      %v935 = vshll.u32 %v895, 8
      %v936 = vmul.u32.u64.compose %v935, %v934
      %v937 = vextract.low.u32 %v936
      %v938 = vextract.high.u32 %v936
      %v939 = vmul.u32.u64.compose %v935, %v930
      %v940 = vextract.low.u32 %v939
      %v941 = vextract.high.u32 %v939
      %v942 = vmul.u32 %v935, %v926
      %v943 = vadd.s32 %v938, %v940
      %vm944 = vc.u32 %v938, %v940
      %v945 = vadd.s32 %v941, 1
      %v946 = vsel %vm944, %v945, %v941
      %v947 = vadd.s32 %v942, %v946
      %v948 = vadd.s32 %v947, 536870912
      %v949 = vshrl.u32 %v948, 30
      %v950 = vshll.u32 %v949, 30
      %v951 = vsub.s32 %v947, %v950
      %vm952 = vcmp.lt.s32.totalorder %v951, 0
      %v953 = vsub.s32 0, %v951
      %v954 = vsel %vm952, %v953, %v951
      %v955 = vclz %v954
      %v956 = vsub.s32 %v955, 2
      %vm957 = vcmp.gt.s32.totalorder 0, %v956
      %v958 = vsel %vm957, 0, %v956
      %v959 = vsub.s32 32, %v958
      %v960 = vshll.u32 %v951, %v958
      %v961 = vshrl.u32 %v943, %v959
      %v962 = vor.u32 %v960, %v961
      %v963 = vsub.s32 4294967266, %v958
      %v964 = vadd.s32 %v963, 127
      %v965 = vshll.u32 %v964, 23
      %v966 = vor.u32 4788187, %v965
      %v967 = vand.u32 2147483647, %v966
      %v969 = vcvt.s32.f32 %v962
      %v970 = vmul.f32 %v969, %v967
      %v971 = vxor.u32 %v970, 2147483648
      %v972 = vsel %vm889, %v971, %v970
      %v973 = vsub.s32 4, %v949
      %v974 = vsel %vm889, %v973, %v949
      %v975 = vsel %vm888, %v364, %v972
      %v976 = vsel %vm888, 0, %v974
      %v977 = vcosq.f32.pop %v975
      %v978 = vsinq.f32.pop %v975
      %vm979 = vweird.f32 %v364
      %v980 = vadd.s32 %v976, 3
      %v981 = vand.u32 %v980, 3
      %vm982 = vcmp.lt.s32.totalorder %v981, 2
      %vm983 = vcmp.eq.s32.totalorder %v981, 0
      %v984 = vxor.u32 %v978, 2147483648
      %v985 = vsel %vm983, %v977, %v984
      %vm986 = vcmp.eq.s32.totalorder %v981, 2
      %v987 = vxor.u32 %v977, 2147483648
      %v988 = vsel %vm986, %v987, %v978
      %v989 = vsel %vm982, %v985, %v988
      %v990 = vsel %vm979, nan, %v989
      %v991 = vand.u32 2147483647, %v365
      %vm992 = vcmp.le.f32.partialorder %v991, 0.7853982
      %vm993 = vcmp.lt.s32.totalorder %v365, 0
      %v994 = vand.u32 %v365, 2139095040
      %v995 = vshrl.u32 %v994, 23
      %v996 = vsub.s32 %v995, 127
      %v997 = vand.u32 2147483647, %v365
      %v998 = vand.u32 %v997, 8388607
      %v999 = vor.u32 %v998, 8388608
      %v1000 = vsub.s32 0, %v999
      %v1001 = vadd.s32 %v996, 1
      %vm1002 = vcmp.gt.s32.totalorder %v1001, 0
      %v1003 = vsel %vm1002, %v1001, 0
      %v1004 = vshrl.u32 %v1003, 5
      %v1005 = vand.u32 %v1003, 31
      %v1006 = vsub.s32 32, %v1005
      %v1007 = vshrl.u32 683565275, %v1006
      %v1008 = vshll.u32 683565275, %v1005
      %v1009 = vshrl.u32 2475754826, %v1006
      %v1010 = vor.u32 %v1008, %v1009
      %v1011 = vshll.u32 2475754826, %v1005
      %v1012 = vshrl.u32 2131351028, %v1006
      %v1013 = vor.u32 %v1011, %v1012
      %v1014 = vshll.u32 2131351028, %v1005
      %v1015 = vshrl.u32 2102212464, %v1006
      %v1016 = vor.u32 %v1014, %v1015
      %v1017 = vshll.u32 2102212464, %v1005
      %v1018 = vshrl.u32 920167782, %v1006
      %v1019 = vor.u32 %v1017, %v1018
      %v1020 = vshll.u32 920167782, %v1005
      %v1021 = vshrl.u32 1326507024, %v1006
      %v1022 = vor.u32 %v1020, %v1021
      %vm1023 = vcmp.lt.s32.totalorder %v1004, 1
      %vm1024 = vcmp.lt.s32.totalorder %v1004, 2
      %vm1025 = vcmp.lt.s32.totalorder %v1004, 3
      %vm1026 = vcmp.lt.s32.totalorder %v1004, 4
      %v1027 = vsel %vm1023, %v1007, %v1010
      %v1028 = vsel %vm1026, %v1016, 2102212464
      %v1029 = vsel %vm1025, %v1013, %v1028
      %v1030 = vsel %vm1024, %v1027, %v1029
      %v1031 = vsel %vm1023, %v1010, %v1013
      %v1032 = vsel %vm1026, %v1019, 920167782
      %v1033 = vsel %vm1025, %v1016, %v1032
      %v1034 = vsel %vm1024, %v1031, %v1033
      %v1035 = vsel %vm1023, %v1013, %v1016
      %v1036 = vsel %vm1026, %v1022, 1326507024
      %v1037 = vsel %vm1025, %v1019, %v1036
      %v1038 = vsel %vm1024, %v1035, %v1037
      %v1039 = vshll.u32 %v999, 8
      %v1040 = vmul.u32.u64.compose %v1039, %v1038
      %v1041 = vextract.low.u32 %v1040
      %v1042 = vextract.high.u32 %v1040
      %v1043 = vmul.u32.u64.compose %v1039, %v1034
      %v1044 = vextract.low.u32 %v1043
      %v1045 = vextract.high.u32 %v1043
      %v1046 = vmul.u32 %v1039, %v1030
      %v1047 = vadd.s32 %v1042, %v1044
      %vm1048 = vc.u32 %v1042, %v1044
      %v1049 = vadd.s32 %v1045, 1
      %v1050 = vsel %vm1048, %v1049, %v1045
      %v1051 = vadd.s32 %v1046, %v1050
      %v1052 = vadd.s32 %v1051, 536870912
      %v1053 = vshrl.u32 %v1052, 30
      %v1054 = vshll.u32 %v1053, 30
      %v1055 = vsub.s32 %v1051, %v1054
      %vm1056 = vcmp.lt.s32.totalorder %v1055, 0
      %v1057 = vsub.s32 0, %v1055
      %v1058 = vsel %vm1056, %v1057, %v1055
      %v1059 = vclz %v1058
      %v1060 = vsub.s32 %v1059, 2
      %vm1061 = vcmp.gt.s32.totalorder 0, %v1060
      %v1062 = vsel %vm1061, 0, %v1060
      %v1063 = vsub.s32 32, %v1062
      %v1064 = vshll.u32 %v1055, %v1062
      %v1065 = vshrl.u32 %v1047, %v1063
      %v1066 = vor.u32 %v1064, %v1065
      %v1067 = vsub.s32 4294967266, %v1062
      %v1068 = vadd.s32 %v1067, 127
      %v1069 = vshll.u32 %v1068, 23
      %v1070 = vor.u32 4788187, %v1069
      %v1071 = vand.u32 2147483647, %v1070
      %v1073 = vcvt.s32.f32 %v1066
      %v1074 = vmul.f32 %v1073, %v1071
      %v1075 = vxor.u32 %v1074, 2147483648
      %v1076 = vsel %vm993, %v1075, %v1074
      %v1077 = vsub.s32 4, %v1053
      %v1078 = vsel %vm993, %v1077, %v1053
      %v1079 = vsel %vm992, %v365, %v1076
      %v1080 = vsel %vm992, 0, %v1078
      %v1081 = vcosq.f32.pop %v1079
      %v1082 = vsinq.f32.pop %v1079
      %vm1083 = vweird.f32 %v365
      %v1084 = vadd.s32 %v1080, 3
      %v1085 = vand.u32 %v1084, 3
      %vm1086 = vcmp.lt.s32.totalorder %v1085, 2
      %vm1087 = vcmp.eq.s32.totalorder %v1085, 0
      %v1088 = vxor.u32 %v1082, 2147483648
      %v1089 = vsel %vm1087, %v1081, %v1088
      %vm1090 = vcmp.eq.s32.totalorder %v1085, 2
      %v1091 = vxor.u32 %v1081, 2147483648
      %v1092 = vsel %vm1090, %v1091, %v1082
      %v1093 = vsel %vm1086, %v1089, %v1092
      %v1094 = vsel %vm1083, nan, %v1093
      %v1095 = vand.u32 2147483647, %v366
      %vm1096 = vcmp.le.f32.partialorder %v1095, 0.7853982
      %vm1097 = vcmp.lt.s32.totalorder %v366, 0
      %v1098 = vand.u32 %v366, 2139095040
      %v1099 = vshrl.u32 %v1098, 23
      %v1100 = vsub.s32 %v1099, 127
      %v1101 = vand.u32 2147483647, %v366
      %v1102 = vand.u32 %v1101, 8388607
      %v1103 = vor.u32 %v1102, 8388608
      %v1104 = vsub.s32 0, %v1103
      %v1105 = vadd.s32 %v1100, 1
      %vm1106 = vcmp.gt.s32.totalorder %v1105, 0
      %v1107 = vsel %vm1106, %v1105, 0
      %v1108 = vshrl.u32 %v1107, 5
      %v1109 = vand.u32 %v1107, 31
      %v1110 = vsub.s32 32, %v1109
      %v1111 = vshrl.u32 683565275, %v1110
      %v1112 = vshll.u32 683565275, %v1109
      %v1113 = vshrl.u32 2475754826, %v1110
      %v1114 = vor.u32 %v1112, %v1113
      %v1115 = vshll.u32 2475754826, %v1109
      %v1116 = vshrl.u32 2131351028, %v1110
      %v1117 = vor.u32 %v1115, %v1116
      %v1118 = vshll.u32 2131351028, %v1109
      %v1119 = vshrl.u32 2102212464, %v1110
      %v1120 = vor.u32 %v1118, %v1119
      %v1121 = vshll.u32 2102212464, %v1109
      %v1122 = vshrl.u32 920167782, %v1110
      %v1123 = vor.u32 %v1121, %v1122
      %v1124 = vshll.u32 920167782, %v1109
      %v1125 = vshrl.u32 1326507024, %v1110
      %v1126 = vor.u32 %v1124, %v1125
      %vm1127 = vcmp.lt.s32.totalorder %v1108, 1
      %vm1128 = vcmp.lt.s32.totalorder %v1108, 2
      %vm1129 = vcmp.lt.s32.totalorder %v1108, 3
      %vm1130 = vcmp.lt.s32.totalorder %v1108, 4
      %v1131 = vsel %vm1127, %v1111, %v1114
      %v1132 = vsel %vm1130, %v1120, 2102212464
      %v1133 = vsel %vm1129, %v1117, %v1132
      %v1134 = vsel %vm1128, %v1131, %v1133
      %v1135 = vsel %vm1127, %v1114, %v1117
      %v1136 = vsel %vm1130, %v1123, 920167782
      %v1137 = vsel %vm1129, %v1120, %v1136
      %v1138 = vsel %vm1128, %v1135, %v1137
      %v1139 = vsel %vm1127, %v1117, %v1120
      %v1140 = vsel %vm1130, %v1126, 1326507024
      %v1141 = vsel %vm1129, %v1123, %v1140
      %v1142 = vsel %vm1128, %v1139, %v1141
      %v1143 = vshll.u32 %v1103, 8
      %v1144 = vmul.u32.u64.compose %v1143, %v1142
      %v1145 = vextract.low.u32 %v1144
      %v1146 = vextract.high.u32 %v1144
      %v1147 = vmul.u32.u64.compose %v1143, %v1138
      %v1148 = vextract.low.u32 %v1147
      %v1149 = vextract.high.u32 %v1147
      %v1150 = vmul.u32 %v1143, %v1134
      %v1151 = vadd.s32 %v1146, %v1148
      %vm1152 = vc.u32 %v1146, %v1148
      %v1153 = vadd.s32 %v1149, 1
      %v1154 = vsel %vm1152, %v1153, %v1149
      %v1155 = vadd.s32 %v1150, %v1154
      %v1156 = vadd.s32 %v1155, 536870912
      %v1157 = vshrl.u32 %v1156, 30
      %v1158 = vshll.u32 %v1157, 30
      %v1159 = vsub.s32 %v1155, %v1158
      %vm1160 = vcmp.lt.s32.totalorder %v1159, 0
      %v1161 = vsub.s32 0, %v1159
      %v1162 = vsel %vm1160, %v1161, %v1159
      %v1163 = vclz %v1162
      %v1164 = vsub.s32 %v1163, 2
      %vm1165 = vcmp.gt.s32.totalorder 0, %v1164
      %v1166 = vsel %vm1165, 0, %v1164
      %v1167 = vsub.s32 32, %v1166
      %v1168 = vshll.u32 %v1159, %v1166
      %v1169 = vshrl.u32 %v1151, %v1167
      %v1170 = vor.u32 %v1168, %v1169
      %v1171 = vsub.s32 4294967266, %v1166
      %v1172 = vadd.s32 %v1171, 127
      %v1173 = vshll.u32 %v1172, 23
      %v1174 = vor.u32 4788187, %v1173
      %v1175 = vand.u32 2147483647, %v1174
      %v1177 = vcvt.s32.f32 %v1170
      %v1178 = vmul.f32 %v1177, %v1175
      %v1179 = vxor.u32 %v1178, 2147483648
      %v1180 = vsel %vm1097, %v1179, %v1178
      %v1181 = vsub.s32 4, %v1157
      %v1182 = vsel %vm1097, %v1181, %v1157
      %v1183 = vsel %vm1096, %v366, %v1180
      %v1184 = vsel %vm1096, 0, %v1182
      %v1185 = vcosq.f32.pop %v1183
      %v1186 = vsinq.f32.pop %v1183
      %vm1187 = vweird.f32 %v366
      %v1188 = vadd.s32 %v1184, 3
      %v1189 = vand.u32 %v1188, 3
      %vm1190 = vcmp.lt.s32.totalorder %v1189, 2
      %vm1191 = vcmp.eq.s32.totalorder %v1189, 0
      %v1192 = vxor.u32 %v1186, 2147483648
      %v1193 = vsel %vm1191, %v1185, %v1192
      %vm1194 = vcmp.eq.s32.totalorder %v1189, 2
      %v1195 = vxor.u32 %v1185, 2147483648
      %v1196 = vsel %vm1194, %v1195, %v1186
      %v1197 = vsel %vm1190, %v1193, %v1196
      %v1198 = vsel %vm1187, nan, %v1197
      %1199 = vst [vmem:[%s271 + $0x80] sm:$0xff] %v470
      %1200 = vst [vmem:[%s271 + $0x88] sm:$0xff] %v574
      %1201 = vst [vmem:[%s271 + $0x90] sm:$0xff] %v678
      %1202 = vst [vmem:[%s271 + $0x98] sm:$0xff] %v782
      %1203 = vst [vmem:[%s271 + $0xa0] sm:$0xff] %v886
      %1204 = vst [vmem:[%s271 + $0xa8] sm:$0xff] %v990
      %1205 = vst [vmem:[%s271 + $0xb0] sm:$0xff] %v1094
      %1206 = vst [vmem:[%s271 + $0xb8] sm:$0xff] %v1198
      %s1207 = scalar_lea.vmem %s251, 1
      %v1208 = vld [vmem:[%s1207] ss:$4 sm:$0xf]
      %v1210 = vlaneseq
      %v1211 = vshrl.u32 %v1210, 7
      %v1212 = vsub.s32 0, %v1211
      %v1213 = vrot.slane %v1208, %v1212
      %v1214 = vlaneseq
      %v1215 = vshrl.u32 %v1214, 7
      %v1216 = vsub.s32 1, %v1215
      %v1217 = vrot.slane %v1208, %v1216
      %v1218 = vlaneseq
      %v1219 = vshrl.u32 %v1218, 7
      %v1220 = vsub.s32 2, %v1219
      %v1221 = vrot.slane %v1208, %v1220
      %v1222 = vlaneseq
      %v1223 = vshrl.u32 %v1222, 7
      %v1224 = vsub.s32 3, %v1223
      %v1225 = vrot.slane %v1208, %v1224
      %v1230 = vmul.f32 %v1213, %v334
      %v1231 = vmul.f32 %v1217, %v334
      %v1232 = vmul.f32 %v1221, %v334
      %v1233 = vmul.f32 %v1225, %v334
      %v1234 = vmul.f32 %v1213, %v339
      %v1235 = vmul.f32 %v1217, %v339
      %v1236 = vmul.f32 %v1221, %v339
      %v1237 = vmul.f32 %v1225, %v339
      %v1238 = vadd.f32 %v1230, %v352
      %v1239 = vadd.f32 %v1231, %v352
      %v1240 = vadd.f32 %v1232, %v352
      %v1241 = vadd.f32 %v1233, %v352
      %v1242 = vadd.f32 %v1234, %v357
      %v1243 = vadd.f32 %v1235, %v357
      %v1244 = vadd.f32 %v1236, %v357
      %v1245 = vadd.f32 %v1237, %v357
      %v1246 = vand.u32 2147483647, %v1238
      %vm1247 = vcmp.le.f32.partialorder %v1246, 0.7853982
      %vm1248 = vcmp.lt.s32.totalorder %v1238, 0
      %v1249 = vand.u32 %v1238, 2139095040
      %v1250 = vshrl.u32 %v1249, 23
      %v1251 = vsub.s32 %v1250, 127
      %v1252 = vand.u32 2147483647, %v1238
      %v1253 = vand.u32 %v1252, 8388607
      %v1254 = vor.u32 %v1253, 8388608
      %v1255 = vsub.s32 0, %v1254
      %v1256 = vadd.s32 %v1251, 1
      %vm1257 = vcmp.gt.s32.totalorder %v1256, 0
      %v1258 = vsel %vm1257, %v1256, 0
      %v1259 = vshrl.u32 %v1258, 5
      %v1260 = vand.u32 %v1258, 31
      %v1261 = vsub.s32 32, %v1260
      %v1262 = vshrl.u32 683565275, %v1261
      %v1263 = vshll.u32 683565275, %v1260
      %v1264 = vshrl.u32 2475754826, %v1261
      %v1265 = vor.u32 %v1263, %v1264
      %v1266 = vshll.u32 2475754826, %v1260
      %v1267 = vshrl.u32 2131351028, %v1261
      %v1268 = vor.u32 %v1266, %v1267
      %v1269 = vshll.u32 2131351028, %v1260
      %v1270 = vshrl.u32 2102212464, %v1261
      %v1271 = vor.u32 %v1269, %v1270
      %v1272 = vshll.u32 2102212464, %v1260
      %v1273 = vshrl.u32 920167782, %v1261
      %v1274 = vor.u32 %v1272, %v1273
      %v1275 = vshll.u32 920167782, %v1260
      %v1276 = vshrl.u32 1326507024, %v1261
      %v1277 = vor.u32 %v1275, %v1276
      %vm1278 = vcmp.lt.s32.totalorder %v1259, 1
      %vm1279 = vcmp.lt.s32.totalorder %v1259, 2
      %vm1280 = vcmp.lt.s32.totalorder %v1259, 3
      %vm1281 = vcmp.lt.s32.totalorder %v1259, 4
      %v1282 = vsel %vm1278, %v1262, %v1265
      %v1283 = vsel %vm1281, %v1271, 2102212464
      %v1284 = vsel %vm1280, %v1268, %v1283
      %v1285 = vsel %vm1279, %v1282, %v1284
      %v1286 = vsel %vm1278, %v1265, %v1268
      %v1287 = vsel %vm1281, %v1274, 920167782
      %v1288 = vsel %vm1280, %v1271, %v1287
      %v1289 = vsel %vm1279, %v1286, %v1288
      %v1290 = vsel %vm1278, %v1268, %v1271
      %v1291 = vsel %vm1281, %v1277, 1326507024
      %v1292 = vsel %vm1280, %v1274, %v1291
      %v1293 = vsel %vm1279, %v1290, %v1292
      %v1294 = vshll.u32 %v1254, 8
      %v1295 = vmul.u32.u64.compose %v1294, %v1293
      %v1296 = vextract.low.u32 %v1295
      %v1297 = vextract.high.u32 %v1295
      %v1298 = vmul.u32.u64.compose %v1294, %v1289
      %v1299 = vextract.low.u32 %v1298
      %v1300 = vextract.high.u32 %v1298
      %v1301 = vmul.u32 %v1294, %v1285
      %v1302 = vadd.s32 %v1297, %v1299
      %vm1303 = vc.u32 %v1297, %v1299
      %v1304 = vadd.s32 %v1300, 1
      %v1305 = vsel %vm1303, %v1304, %v1300
      %v1306 = vadd.s32 %v1301, %v1305
      %v1307 = vadd.s32 %v1306, 536870912
      %v1308 = vshrl.u32 %v1307, 30
      %v1309 = vshll.u32 %v1308, 30
      %v1310 = vsub.s32 %v1306, %v1309
      %vm1311 = vcmp.lt.s32.totalorder %v1310, 0
      %v1312 = vsub.s32 0, %v1310
      %v1313 = vsel %vm1311, %v1312, %v1310
      %v1314 = vclz %v1313
      %v1315 = vsub.s32 %v1314, 2
      %vm1316 = vcmp.gt.s32.totalorder 0, %v1315
      %v1317 = vsel %vm1316, 0, %v1315
      %v1318 = vsub.s32 32, %v1317
      %v1319 = vshll.u32 %v1310, %v1317
      %v1320 = vshrl.u32 %v1302, %v1318
      %v1321 = vor.u32 %v1319, %v1320
      %v1322 = vsub.s32 4294967266, %v1317
      %v1323 = vadd.s32 %v1322, 127
      %v1324 = vshll.u32 %v1323, 23
      %v1325 = vor.u32 4788187, %v1324
      %v1326 = vand.u32 2147483647, %v1325
      %v1328 = vcvt.s32.f32 %v1321
      %v1329 = vmul.f32 %v1328, %v1326
      %v1330 = vxor.u32 %v1329, 2147483648
      %v1331 = vsel %vm1248, %v1330, %v1329
      %v1332 = vsub.s32 4, %v1308
      %v1333 = vsel %vm1248, %v1332, %v1308
      %v1334 = vsel %vm1247, %v1238, %v1331
      %v1335 = vsel %vm1247, 0, %v1333
      %v1336 = vcosq.f32.pop %v1334
      %v1337 = vsinq.f32.pop %v1334
      %vm1338 = vweird.f32 %v1238
      %v1339 = vadd.s32 %v1335, 3
      %v1340 = vand.u32 %v1339, 3
      %vm1341 = vcmp.lt.s32.totalorder %v1340, 2
      %vm1342 = vcmp.eq.s32.totalorder %v1340, 0
      %v1343 = vxor.u32 %v1337, 2147483648
      %v1344 = vsel %vm1342, %v1336, %v1343
      %vm1345 = vcmp.eq.s32.totalorder %v1340, 2
      %v1346 = vxor.u32 %v1336, 2147483648
      %v1347 = vsel %vm1345, %v1346, %v1337
      %v1348 = vsel %vm1341, %v1344, %v1347
      %v1349 = vsel %vm1338, nan, %v1348
      %v1350 = vand.u32 2147483647, %v1239
      %vm1351 = vcmp.le.f32.partialorder %v1350, 0.7853982
      %vm1352 = vcmp.lt.s32.totalorder %v1239, 0
      %v1353 = vand.u32 %v1239, 2139095040
      %v1354 = vshrl.u32 %v1353, 23
      %v1355 = vsub.s32 %v1354, 127
      %v1356 = vand.u32 2147483647, %v1239
      %v1357 = vand.u32 %v1356, 8388607
      %v1358 = vor.u32 %v1357, 8388608
      %v1359 = vsub.s32 0, %v1358
      %v1360 = vadd.s32 %v1355, 1
      %vm1361 = vcmp.gt.s32.totalorder %v1360, 0
      %v1362 = vsel %vm1361, %v1360, 0
      %v1363 = vshrl.u32 %v1362, 5
      %v1364 = vand.u32 %v1362, 31
      %v1365 = vsub.s32 32, %v1364
      %v1366 = vshrl.u32 683565275, %v1365
      %v1367 = vshll.u32 683565275, %v1364
      %v1368 = vshrl.u32 2475754826, %v1365
      %v1369 = vor.u32 %v1367, %v1368
      %v1370 = vshll.u32 2475754826, %v1364
      %v1371 = vshrl.u32 2131351028, %v1365
      %v1372 = vor.u32 %v1370, %v1371
      %v1373 = vshll.u32 2131351028, %v1364
      %v1374 = vshrl.u32 2102212464, %v1365
      %v1375 = vor.u32 %v1373, %v1374
      %v1376 = vshll.u32 2102212464, %v1364
      %v1377 = vshrl.u32 920167782, %v1365
      %v1378 = vor.u32 %v1376, %v1377
      %v1379 = vshll.u32 920167782, %v1364
      %v1380 = vshrl.u32 1326507024, %v1365
      %v1381 = vor.u32 %v1379, %v1380
      %vm1382 = vcmp.lt.s32.totalorder %v1363, 1
      %vm1383 = vcmp.lt.s32.totalorder %v1363, 2
      %vm1384 = vcmp.lt.s32.totalorder %v1363, 3
      %vm1385 = vcmp.lt.s32.totalorder %v1363, 4
      %v1386 = vsel %vm1382, %v1366, %v1369
      %v1387 = vsel %vm1385, %v1375, 2102212464
      %v1388 = vsel %vm1384, %v1372, %v1387
      %v1389 = vsel %vm1383, %v1386, %v1388
      %v1390 = vsel %vm1382, %v1369, %v1372
      %v1391 = vsel %vm1385, %v1378, 920167782
      %v1392 = vsel %vm1384, %v1375, %v1391
      %v1393 = vsel %vm1383, %v1390, %v1392
      %v1394 = vsel %vm1382, %v1372, %v1375
      %v1395 = vsel %vm1385, %v1381, 1326507024
      %v1396 = vsel %vm1384, %v1378, %v1395
      %v1397 = vsel %vm1383, %v1394, %v1396
      %v1398 = vshll.u32 %v1358, 8
      %v1399 = vmul.u32.u64.compose %v1398, %v1397
      %v1400 = vextract.low.u32 %v1399
      %v1401 = vextract.high.u32 %v1399
      %v1402 = vmul.u32.u64.compose %v1398, %v1393
      %v1403 = vextract.low.u32 %v1402
      %v1404 = vextract.high.u32 %v1402
      %v1405 = vmul.u32 %v1398, %v1389
      %v1406 = vadd.s32 %v1401, %v1403
      %vm1407 = vc.u32 %v1401, %v1403
      %v1408 = vadd.s32 %v1404, 1
      %v1409 = vsel %vm1407, %v1408, %v1404
      %v1410 = vadd.s32 %v1405, %v1409
      %v1411 = vadd.s32 %v1410, 536870912
      %v1412 = vshrl.u32 %v1411, 30
      %v1413 = vshll.u32 %v1412, 30
      %v1414 = vsub.s32 %v1410, %v1413
      %vm1415 = vcmp.lt.s32.totalorder %v1414, 0
      %v1416 = vsub.s32 0, %v1414
      %v1417 = vsel %vm1415, %v1416, %v1414
      %v1418 = vclz %v1417
      %v1419 = vsub.s32 %v1418, 2
      %vm1420 = vcmp.gt.s32.totalorder 0, %v1419
      %v1421 = vsel %vm1420, 0, %v1419
      %v1422 = vsub.s32 32, %v1421
      %v1423 = vshll.u32 %v1414, %v1421
      %v1424 = vshrl.u32 %v1406, %v1422
      %v1425 = vor.u32 %v1423, %v1424
      %v1426 = vsub.s32 4294967266, %v1421
      %v1427 = vadd.s32 %v1426, 127
      %v1428 = vshll.u32 %v1427, 23
      %v1429 = vor.u32 4788187, %v1428
      %v1430 = vand.u32 2147483647, %v1429
      %v1432 = vcvt.s32.f32 %v1425
      %v1433 = vmul.f32 %v1432, %v1430
      %v1434 = vxor.u32 %v1433, 2147483648
      %v1435 = vsel %vm1352, %v1434, %v1433
      %v1436 = vsub.s32 4, %v1412
      %v1437 = vsel %vm1352, %v1436, %v1412
      %v1438 = vsel %vm1351, %v1239, %v1435
      %v1439 = vsel %vm1351, 0, %v1437
      %v1440 = vcosq.f32.pop %v1438
      %v1441 = vsinq.f32.pop %v1438
      %vm1442 = vweird.f32 %v1239
      %v1443 = vadd.s32 %v1439, 3
      %v1444 = vand.u32 %v1443, 3
      %vm1445 = vcmp.lt.s32.totalorder %v1444, 2
      %vm1446 = vcmp.eq.s32.totalorder %v1444, 0
      %v1447 = vxor.u32 %v1441, 2147483648
      %v1448 = vsel %vm1446, %v1440, %v1447
      %vm1449 = vcmp.eq.s32.totalorder %v1444, 2
      %v1450 = vxor.u32 %v1440, 2147483648
      %v1451 = vsel %vm1449, %v1450, %v1441
      %v1452 = vsel %vm1445, %v1448, %v1451
      %v1453 = vsel %vm1442, nan, %v1452
      %v1454 = vand.u32 2147483647, %v1240
      %vm1455 = vcmp.le.f32.partialorder %v1454, 0.7853982
      %vm1456 = vcmp.lt.s32.totalorder %v1240, 0
      %v1457 = vand.u32 %v1240, 2139095040
      %v1458 = vshrl.u32 %v1457, 23
      %v1459 = vsub.s32 %v1458, 127
      %v1460 = vand.u32 2147483647, %v1240
      %v1461 = vand.u32 %v1460, 8388607
      %v1462 = vor.u32 %v1461, 8388608
      %v1463 = vsub.s32 0, %v1462
      %v1464 = vadd.s32 %v1459, 1
      %vm1465 = vcmp.gt.s32.totalorder %v1464, 0
      %v1466 = vsel %vm1465, %v1464, 0
      %v1467 = vshrl.u32 %v1466, 5
      %v1468 = vand.u32 %v1466, 31
      %v1469 = vsub.s32 32, %v1468
      %v1470 = vshrl.u32 683565275, %v1469
      %v1471 = vshll.u32 683565275, %v1468
      %v1472 = vshrl.u32 2475754826, %v1469
      %v1473 = vor.u32 %v1471, %v1472
      %v1474 = vshll.u32 2475754826, %v1468
      %v1475 = vshrl.u32 2131351028, %v1469
      %v1476 = vor.u32 %v1474, %v1475
      %v1477 = vshll.u32 2131351028, %v1468
      %v1478 = vshrl.u32 2102212464, %v1469
      %v1479 = vor.u32 %v1477, %v1478
      %v1480 = vshll.u32 2102212464, %v1468
      %v1481 = vshrl.u32 920167782, %v1469
      %v1482 = vor.u32 %v1480, %v1481
      %v1483 = vshll.u32 920167782, %v1468
      %v1484 = vshrl.u32 1326507024, %v1469
      %v1485 = vor.u32 %v1483, %v1484
      %vm1486 = vcmp.lt.s32.totalorder %v1467, 1
      %vm1487 = vcmp.lt.s32.totalorder %v1467, 2
      %vm1488 = vcmp.lt.s32.totalorder %v1467, 3
      %vm1489 = vcmp.lt.s32.totalorder %v1467, 4
      %v1490 = vsel %vm1486, %v1470, %v1473
      %v1491 = vsel %vm1489, %v1479, 2102212464
      %v1492 = vsel %vm1488, %v1476, %v1491
      %v1493 = vsel %vm1487, %v1490, %v1492
      %v1494 = vsel %vm1486, %v1473, %v1476
      %v1495 = vsel %vm1489, %v1482, 920167782
      %v1496 = vsel %vm1488, %v1479, %v1495
      %v1497 = vsel %vm1487, %v1494, %v1496
      %v1498 = vsel %vm1486, %v1476, %v1479
      %v1499 = vsel %vm1489, %v1485, 1326507024
      %v1500 = vsel %vm1488, %v1482, %v1499
      %v1501 = vsel %vm1487, %v1498, %v1500
      %v1502 = vshll.u32 %v1462, 8
      %v1503 = vmul.u32.u64.compose %v1502, %v1501
      %v1504 = vextract.low.u32 %v1503
      %v1505 = vextract.high.u32 %v1503
      %v1506 = vmul.u32.u64.compose %v1502, %v1497
      %v1507 = vextract.low.u32 %v1506
      %v1508 = vextract.high.u32 %v1506
      %v1509 = vmul.u32 %v1502, %v1493
      %v1510 = vadd.s32 %v1505, %v1507
      %vm1511 = vc.u32 %v1505, %v1507
      %v1512 = vadd.s32 %v1508, 1
      %v1513 = vsel %vm1511, %v1512, %v1508
      %v1514 = vadd.s32 %v1509, %v1513
      %v1515 = vadd.s32 %v1514, 536870912
      %v1516 = vshrl.u32 %v1515, 30
      %v1517 = vshll.u32 %v1516, 30
      %v1518 = vsub.s32 %v1514, %v1517
      %vm1519 = vcmp.lt.s32.totalorder %v1518, 0
      %v1520 = vsub.s32 0, %v1518
      %v1521 = vsel %vm1519, %v1520, %v1518
      %v1522 = vclz %v1521
      %v1523 = vsub.s32 %v1522, 2
      %vm1524 = vcmp.gt.s32.totalorder 0, %v1523
      %v1525 = vsel %vm1524, 0, %v1523
      %v1526 = vsub.s32 32, %v1525
      %v1527 = vshll.u32 %v1518, %v1525
      %v1528 = vshrl.u32 %v1510, %v1526
      %v1529 = vor.u32 %v1527, %v1528
      %v1530 = vsub.s32 4294967266, %v1525
      %v1531 = vadd.s32 %v1530, 127
      %v1532 = vshll.u32 %v1531, 23
      %v1533 = vor.u32 4788187, %v1532
      %v1534 = vand.u32 2147483647, %v1533
      %v1536 = vcvt.s32.f32 %v1529
      %v1537 = vmul.f32 %v1536, %v1534
      %v1538 = vxor.u32 %v1537, 2147483648
      %v1539 = vsel %vm1456, %v1538, %v1537
      %v1540 = vsub.s32 4, %v1516
      %v1541 = vsel %vm1456, %v1540, %v1516
      %v1542 = vsel %vm1455, %v1240, %v1539
      %v1543 = vsel %vm1455, 0, %v1541
      %v1544 = vcosq.f32.pop %v1542
      %v1545 = vsinq.f32.pop %v1542
      %vm1546 = vweird.f32 %v1240
      %v1547 = vadd.s32 %v1543, 3
      %v1548 = vand.u32 %v1547, 3
      %vm1549 = vcmp.lt.s32.totalorder %v1548, 2
      %vm1550 = vcmp.eq.s32.totalorder %v1548, 0
      %v1551 = vxor.u32 %v1545, 2147483648
      %v1552 = vsel %vm1550, %v1544, %v1551
      %vm1553 = vcmp.eq.s32.totalorder %v1548, 2
      %v1554 = vxor.u32 %v1544, 2147483648
      %v1555 = vsel %vm1553, %v1554, %v1545
      %v1556 = vsel %vm1549, %v1552, %v1555
      %v1557 = vsel %vm1546, nan, %v1556
      %v1558 = vand.u32 2147483647, %v1241
      %vm1559 = vcmp.le.f32.partialorder %v1558, 0.7853982
      %vm1560 = vcmp.lt.s32.totalorder %v1241, 0
      %v1561 = vand.u32 %v1241, 2139095040
      %v1562 = vshrl.u32 %v1561, 23
      %v1563 = vsub.s32 %v1562, 127
      %v1564 = vand.u32 2147483647, %v1241
      %v1565 = vand.u32 %v1564, 8388607
      %v1566 = vor.u32 %v1565, 8388608
      %v1567 = vsub.s32 0, %v1566
      %v1568 = vadd.s32 %v1563, 1
      %vm1569 = vcmp.gt.s32.totalorder %v1568, 0
      %v1570 = vsel %vm1569, %v1568, 0
      %v1571 = vshrl.u32 %v1570, 5
      %v1572 = vand.u32 %v1570, 31
      %v1573 = vsub.s32 32, %v1572
      %v1574 = vshrl.u32 683565275, %v1573
      %v1575 = vshll.u32 683565275, %v1572
      %v1576 = vshrl.u32 2475754826, %v1573
      %v1577 = vor.u32 %v1575, %v1576
      %v1578 = vshll.u32 2475754826, %v1572
      %v1579 = vshrl.u32 2131351028, %v1573
      %v1580 = vor.u32 %v1578, %v1579
      %v1581 = vshll.u32 2131351028, %v1572
      %v1582 = vshrl.u32 2102212464, %v1573
      %v1583 = vor.u32 %v1581, %v1582
      %v1584 = vshll.u32 2102212464, %v1572
      %v1585 = vshrl.u32 920167782, %v1573
      %v1586 = vor.u32 %v1584, %v1585
      %v1587 = vshll.u32 920167782, %v1572
      %v1588 = vshrl.u32 1326507024, %v1573
      %v1589 = vor.u32 %v1587, %v1588
      %vm1590 = vcmp.lt.s32.totalorder %v1571, 1
      %vm1591 = vcmp.lt.s32.totalorder %v1571, 2
      %vm1592 = vcmp.lt.s32.totalorder %v1571, 3
      %vm1593 = vcmp.lt.s32.totalorder %v1571, 4
      %v1594 = vsel %vm1590, %v1574, %v1577
      %v1595 = vsel %vm1593, %v1583, 2102212464
      %v1596 = vsel %vm1592, %v1580, %v1595
      %v1597 = vsel %vm1591, %v1594, %v1596
      %v1598 = vsel %vm1590, %v1577, %v1580
      %v1599 = vsel %vm1593, %v1586, 920167782
      %v1600 = vsel %vm1592, %v1583, %v1599
      %v1601 = vsel %vm1591, %v1598, %v1600
      %v1602 = vsel %vm1590, %v1580, %v1583
      %v1603 = vsel %vm1593, %v1589, 1326507024
      %v1604 = vsel %vm1592, %v1586, %v1603
      %v1605 = vsel %vm1591, %v1602, %v1604
      %v1606 = vshll.u32 %v1566, 8
      %v1607 = vmul.u32.u64.compose %v1606, %v1605
      %v1608 = vextract.low.u32 %v1607
      %v1609 = vextract.high.u32 %v1607
      %v1610 = vmul.u32.u64.compose %v1606, %v1601
      %v1611 = vextract.low.u32 %v1610
      %v1612 = vextract.high.u32 %v1610
      %v1613 = vmul.u32 %v1606, %v1597
      %v1614 = vadd.s32 %v1609, %v1611
      %vm1615 = vc.u32 %v1609, %v1611
      %v1616 = vadd.s32 %v1612, 1
      %v1617 = vsel %vm1615, %v1616, %v1612
      %v1618 = vadd.s32 %v1613, %v1617
      %v1619 = vadd.s32 %v1618, 536870912
      %v1620 = vshrl.u32 %v1619, 30
      %v1621 = vshll.u32 %v1620, 30
      %v1622 = vsub.s32 %v1618, %v1621
      %vm1623 = vcmp.lt.s32.totalorder %v1622, 0
      %v1624 = vsub.s32 0, %v1622
      %v1625 = vsel %vm1623, %v1624, %v1622
      %v1626 = vclz %v1625
      %v1627 = vsub.s32 %v1626, 2
      %vm1628 = vcmp.gt.s32.totalorder 0, %v1627
      %v1629 = vsel %vm1628, 0, %v1627
      %v1630 = vsub.s32 32, %v1629
      %v1631 = vshll.u32 %v1622, %v1629
      %v1632 = vshrl.u32 %v1614, %v1630
      %v1633 = vor.u32 %v1631, %v1632
      %v1634 = vsub.s32 4294967266, %v1629
      %v1635 = vadd.s32 %v1634, 127
      %v1636 = vshll.u32 %v1635, 23
      %v1637 = vor.u32 4788187, %v1636
      %v1638 = vand.u32 2147483647, %v1637
      %v1640 = vcvt.s32.f32 %v1633
      %v1641 = vmul.f32 %v1640, %v1638
      %v1642 = vxor.u32 %v1641, 2147483648
      %v1643 = vsel %vm1560, %v1642, %v1641
      %v1644 = vsub.s32 4, %v1620
      %v1645 = vsel %vm1560, %v1644, %v1620
      %v1646 = vsel %vm1559, %v1241, %v1643
      %v1647 = vsel %vm1559, 0, %v1645
      %v1648 = vcosq.f32.pop %v1646
      %v1649 = vsinq.f32.pop %v1646
      %vm1650 = vweird.f32 %v1241
      %v1651 = vadd.s32 %v1647, 3
      %v1652 = vand.u32 %v1651, 3
      %vm1653 = vcmp.lt.s32.totalorder %v1652, 2
      %vm1654 = vcmp.eq.s32.totalorder %v1652, 0
      %v1655 = vxor.u32 %v1649, 2147483648
      %v1656 = vsel %vm1654, %v1648, %v1655
      %vm1657 = vcmp.eq.s32.totalorder %v1652, 2
      %v1658 = vxor.u32 %v1648, 2147483648
      %v1659 = vsel %vm1657, %v1658, %v1649
      %v1660 = vsel %vm1653, %v1656, %v1659
      %v1661 = vsel %vm1650, nan, %v1660
      %v1662 = vand.u32 2147483647, %v1242
      %vm1663 = vcmp.le.f32.partialorder %v1662, 0.7853982
      %vm1664 = vcmp.lt.s32.totalorder %v1242, 0
      %v1665 = vand.u32 %v1242, 2139095040
      %v1666 = vshrl.u32 %v1665, 23
      %v1667 = vsub.s32 %v1666, 127
      %v1668 = vand.u32 2147483647, %v1242
      %v1669 = vand.u32 %v1668, 8388607
      %v1670 = vor.u32 %v1669, 8388608
      %v1671 = vsub.s32 0, %v1670
      %v1672 = vadd.s32 %v1667, 1
      %vm1673 = vcmp.gt.s32.totalorder %v1672, 0
      %v1674 = vsel %vm1673, %v1672, 0
      %v1675 = vshrl.u32 %v1674, 5
      %v1676 = vand.u32 %v1674, 31
      %v1677 = vsub.s32 32, %v1676
      %v1678 = vshrl.u32 683565275, %v1677
      %v1679 = vshll.u32 683565275, %v1676
      %v1680 = vshrl.u32 2475754826, %v1677
      %v1681 = vor.u32 %v1679, %v1680
      %v1682 = vshll.u32 2475754826, %v1676
      %v1683 = vshrl.u32 2131351028, %v1677
      %v1684 = vor.u32 %v1682, %v1683
      %v1685 = vshll.u32 2131351028, %v1676
      %v1686 = vshrl.u32 2102212464, %v1677
      %v1687 = vor.u32 %v1685, %v1686
      %v1688 = vshll.u32 2102212464, %v1676
      %v1689 = vshrl.u32 920167782, %v1677
      %v1690 = vor.u32 %v1688, %v1689
      %v1691 = vshll.u32 920167782, %v1676
      %v1692 = vshrl.u32 1326507024, %v1677
      %v1693 = vor.u32 %v1691, %v1692
      %vm1694 = vcmp.lt.s32.totalorder %v1675, 1
      %vm1695 = vcmp.lt.s32.totalorder %v1675, 2
      %vm1696 = vcmp.lt.s32.totalorder %v1675, 3
      %vm1697 = vcmp.lt.s32.totalorder %v1675, 4
      %v1698 = vsel %vm1694, %v1678, %v1681
      %v1699 = vsel %vm1697, %v1687, 2102212464
      %v1700 = vsel %vm1696, %v1684, %v1699
      %v1701 = vsel %vm1695, %v1698, %v1700
      %v1702 = vsel %vm1694, %v1681, %v1684
      %v1703 = vsel %vm1697, %v1690, 920167782
      %v1704 = vsel %vm1696, %v1687, %v1703
      %v1705 = vsel %vm1695, %v1702, %v1704
      %v1706 = vsel %vm1694, %v1684, %v1687
      %v1707 = vsel %vm1697, %v1693, 1326507024
      %v1708 = vsel %vm1696, %v1690, %v1707
      %v1709 = vsel %vm1695, %v1706, %v1708
      %v1710 = vshll.u32 %v1670, 8
      %v1711 = vmul.u32.u64.compose %v1710, %v1709
      %v1712 = vextract.low.u32 %v1711
      %v1713 = vextract.high.u32 %v1711
      %v1714 = vmul.u32.u64.compose %v1710, %v1705
      %v1715 = vextract.low.u32 %v1714
      %v1716 = vextract.high.u32 %v1714
      %v1717 = vmul.u32 %v1710, %v1701
      %v1718 = vadd.s32 %v1713, %v1715
      %vm1719 = vc.u32 %v1713, %v1715
      %v1720 = vadd.s32 %v1716, 1
      %v1721 = vsel %vm1719, %v1720, %v1716
      %v1722 = vadd.s32 %v1717, %v1721
      %v1723 = vadd.s32 %v1722, 536870912
      %v1724 = vshrl.u32 %v1723, 30
      %v1725 = vshll.u32 %v1724, 30
      %v1726 = vsub.s32 %v1722, %v1725
      %vm1727 = vcmp.lt.s32.totalorder %v1726, 0
      %v1728 = vsub.s32 0, %v1726
      %v1729 = vsel %vm1727, %v1728, %v1726
      %v1730 = vclz %v1729
      %v1731 = vsub.s32 %v1730, 2
      %vm1732 = vcmp.gt.s32.totalorder 0, %v1731
      %v1733 = vsel %vm1732, 0, %v1731
      %v1734 = vsub.s32 32, %v1733
      %v1735 = vshll.u32 %v1726, %v1733
      %v1736 = vshrl.u32 %v1718, %v1734
      %v1737 = vor.u32 %v1735, %v1736
      %v1738 = vsub.s32 4294967266, %v1733
      %v1739 = vadd.s32 %v1738, 127
      %v1740 = vshll.u32 %v1739, 23
      %v1741 = vor.u32 4788187, %v1740
      %v1742 = vand.u32 2147483647, %v1741
      %v1744 = vcvt.s32.f32 %v1737
      %v1745 = vmul.f32 %v1744, %v1742
      %v1746 = vxor.u32 %v1745, 2147483648
      %v1747 = vsel %vm1664, %v1746, %v1745
      %v1748 = vsub.s32 4, %v1724
      %v1749 = vsel %vm1664, %v1748, %v1724
      %v1750 = vsel %vm1663, %v1242, %v1747
      %v1751 = vsel %vm1663, 0, %v1749
      %v1752 = vcosq.f32.pop %v1750
      %v1753 = vsinq.f32.pop %v1750
      %vm1754 = vweird.f32 %v1242
      %v1755 = vadd.s32 %v1751, 3
      %v1756 = vand.u32 %v1755, 3
      %vm1757 = vcmp.lt.s32.totalorder %v1756, 2
      %vm1758 = vcmp.eq.s32.totalorder %v1756, 0
      %v1759 = vxor.u32 %v1753, 2147483648
      %v1760 = vsel %vm1758, %v1752, %v1759
      %vm1761 = vcmp.eq.s32.totalorder %v1756, 2
      %v1762 = vxor.u32 %v1752, 2147483648
      %v1763 = vsel %vm1761, %v1762, %v1753
      %v1764 = vsel %vm1757, %v1760, %v1763
      %v1765 = vsel %vm1754, nan, %v1764
      %v1766 = vand.u32 2147483647, %v1243
      %vm1767 = vcmp.le.f32.partialorder %v1766, 0.7853982
      %vm1768 = vcmp.lt.s32.totalorder %v1243, 0
      %v1769 = vand.u32 %v1243, 2139095040
      %v1770 = vshrl.u32 %v1769, 23
      %v1771 = vsub.s32 %v1770, 127
      %v1772 = vand.u32 2147483647, %v1243
      %v1773 = vand.u32 %v1772, 8388607
      %v1774 = vor.u32 %v1773, 8388608
      %v1775 = vsub.s32 0, %v1774
      %v1776 = vadd.s32 %v1771, 1
      %vm1777 = vcmp.gt.s32.totalorder %v1776, 0
      %v1778 = vsel %vm1777, %v1776, 0
      %v1779 = vshrl.u32 %v1778, 5
      %v1780 = vand.u32 %v1778, 31
      %v1781 = vsub.s32 32, %v1780
      %v1782 = vshrl.u32 683565275, %v1781
      %v1783 = vshll.u32 683565275, %v1780
      %v1784 = vshrl.u32 2475754826, %v1781
      %v1785 = vor.u32 %v1783, %v1784
      %v1786 = vshll.u32 2475754826, %v1780
      %v1787 = vshrl.u32 2131351028, %v1781
      %v1788 = vor.u32 %v1786, %v1787
      %v1789 = vshll.u32 2131351028, %v1780
      %v1790 = vshrl.u32 2102212464, %v1781
      %v1791 = vor.u32 %v1789, %v1790
      %v1792 = vshll.u32 2102212464, %v1780
      %v1793 = vshrl.u32 920167782, %v1781
      %v1794 = vor.u32 %v1792, %v1793
      %v1795 = vshll.u32 920167782, %v1780
      %v1796 = vshrl.u32 1326507024, %v1781
      %v1797 = vor.u32 %v1795, %v1796
      %vm1798 = vcmp.lt.s32.totalorder %v1779, 1
      %vm1799 = vcmp.lt.s32.totalorder %v1779, 2
      %vm1800 = vcmp.lt.s32.totalorder %v1779, 3
      %vm1801 = vcmp.lt.s32.totalorder %v1779, 4
      %v1802 = vsel %vm1798, %v1782, %v1785
      %v1803 = vsel %vm1801, %v1791, 2102212464
      %v1804 = vsel %vm1800, %v1788, %v1803
      %v1805 = vsel %vm1799, %v1802, %v1804
      %v1806 = vsel %vm1798, %v1785, %v1788
      %v1807 = vsel %vm1801, %v1794, 920167782
      %v1808 = vsel %vm1800, %v1791, %v1807
      %v1809 = vsel %vm1799, %v1806, %v1808
      %v1810 = vsel %vm1798, %v1788, %v1791
      %v1811 = vsel %vm1801, %v1797, 1326507024
      %v1812 = vsel %vm1800, %v1794, %v1811
      %v1813 = vsel %vm1799, %v1810, %v1812
      %v1814 = vshll.u32 %v1774, 8
      %v1815 = vmul.u32.u64.compose %v1814, %v1813
      %v1816 = vextract.low.u32 %v1815
      %v1817 = vextract.high.u32 %v1815
      %v1818 = vmul.u32.u64.compose %v1814, %v1809
      %v1819 = vextract.low.u32 %v1818
      %v1820 = vextract.high.u32 %v1818
      %v1821 = vmul.u32 %v1814, %v1805
      %v1822 = vadd.s32 %v1817, %v1819
      %vm1823 = vc.u32 %v1817, %v1819
      %v1824 = vadd.s32 %v1820, 1
      %v1825 = vsel %vm1823, %v1824, %v1820
      %v1826 = vadd.s32 %v1821, %v1825
      %v1827 = vadd.s32 %v1826, 536870912
      %v1828 = vshrl.u32 %v1827, 30
      %v1829 = vshll.u32 %v1828, 30
      %v1830 = vsub.s32 %v1826, %v1829
      %vm1831 = vcmp.lt.s32.totalorder %v1830, 0
      %v1832 = vsub.s32 0, %v1830
      %v1833 = vsel %vm1831, %v1832, %v1830
      %v1834 = vclz %v1833
      %v1835 = vsub.s32 %v1834, 2
      %vm1836 = vcmp.gt.s32.totalorder 0, %v1835
      %v1837 = vsel %vm1836, 0, %v1835
      %v1838 = vsub.s32 32, %v1837
      %v1839 = vshll.u32 %v1830, %v1837
      %v1840 = vshrl.u32 %v1822, %v1838
      %v1841 = vor.u32 %v1839, %v1840
      %v1842 = vsub.s32 4294967266, %v1837
      %v1843 = vadd.s32 %v1842, 127
      %v1844 = vshll.u32 %v1843, 23
      %v1845 = vor.u32 4788187, %v1844
      %v1846 = vand.u32 2147483647, %v1845
      %v1848 = vcvt.s32.f32 %v1841
      %v1849 = vmul.f32 %v1848, %v1846
      %v1850 = vxor.u32 %v1849, 2147483648
      %v1851 = vsel %vm1768, %v1850, %v1849
      %v1852 = vsub.s32 4, %v1828
      %v1853 = vsel %vm1768, %v1852, %v1828
      %v1854 = vsel %vm1767, %v1243, %v1851
      %v1855 = vsel %vm1767, 0, %v1853
      %v1856 = vcosq.f32.pop %v1854
      %v1857 = vsinq.f32.pop %v1854
      %vm1858 = vweird.f32 %v1243
      %v1859 = vadd.s32 %v1855, 3
      %v1860 = vand.u32 %v1859, 3
      %vm1861 = vcmp.lt.s32.totalorder %v1860, 2
      %vm1862 = vcmp.eq.s32.totalorder %v1860, 0
      %v1863 = vxor.u32 %v1857, 2147483648
      %v1864 = vsel %vm1862, %v1856, %v1863
      %vm1865 = vcmp.eq.s32.totalorder %v1860, 2
      %v1866 = vxor.u32 %v1856, 2147483648
      %v1867 = vsel %vm1865, %v1866, %v1857
      %v1868 = vsel %vm1861, %v1864, %v1867
      %v1869 = vsel %vm1858, nan, %v1868
      %v1870 = vand.u32 2147483647, %v1244
      %vm1871 = vcmp.le.f32.partialorder %v1870, 0.7853982
      %vm1872 = vcmp.lt.s32.totalorder %v1244, 0
      %v1873 = vand.u32 %v1244, 2139095040
      %v1874 = vshrl.u32 %v1873, 23
      %v1875 = vsub.s32 %v1874, 127
      %v1876 = vand.u32 2147483647, %v1244
      %v1877 = vand.u32 %v1876, 8388607
      %v1878 = vor.u32 %v1877, 8388608
      %v1879 = vsub.s32 0, %v1878
      %v1880 = vadd.s32 %v1875, 1
      %vm1881 = vcmp.gt.s32.totalorder %v1880, 0
      %v1882 = vsel %vm1881, %v1880, 0
      %v1883 = vshrl.u32 %v1882, 5
      %v1884 = vand.u32 %v1882, 31
      %v1885 = vsub.s32 32, %v1884
      %v1886 = vshrl.u32 683565275, %v1885
      %v1887 = vshll.u32 683565275, %v1884
      %v1888 = vshrl.u32 2475754826, %v1885
      %v1889 = vor.u32 %v1887, %v1888
      %v1890 = vshll.u32 2475754826, %v1884
      %v1891 = vshrl.u32 2131351028, %v1885
      %v1892 = vor.u32 %v1890, %v1891
      %v1893 = vshll.u32 2131351028, %v1884
      %v1894 = vshrl.u32 2102212464, %v1885
      %v1895 = vor.u32 %v1893, %v1894
      %v1896 = vshll.u32 2102212464, %v1884
      %v1897 = vshrl.u32 920167782, %v1885
      %v1898 = vor.u32 %v1896, %v1897
      %v1899 = vshll.u32 920167782, %v1884
      %v1900 = vshrl.u32 1326507024, %v1885
      %v1901 = vor.u32 %v1899, %v1900
      %vm1902 = vcmp.lt.s32.totalorder %v1883, 1
      %vm1903 = vcmp.lt.s32.totalorder %v1883, 2
      %vm1904 = vcmp.lt.s32.totalorder %v1883, 3
      %vm1905 = vcmp.lt.s32.totalorder %v1883, 4
      %v1906 = vsel %vm1902, %v1886, %v1889
      %v1907 = vsel %vm1905, %v1895, 2102212464
      %v1908 = vsel %vm1904, %v1892, %v1907
      %v1909 = vsel %vm1903, %v1906, %v1908
      %v1910 = vsel %vm1902, %v1889, %v1892
      %v1911 = vsel %vm1905, %v1898, 920167782
      %v1912 = vsel %vm1904, %v1895, %v1911
      %v1913 = vsel %vm1903, %v1910, %v1912
      %v1914 = vsel %vm1902, %v1892, %v1895
      %v1915 = vsel %vm1905, %v1901, 1326507024
      %v1916 = vsel %vm1904, %v1898, %v1915
      %v1917 = vsel %vm1903, %v1914, %v1916
      %v1918 = vshll.u32 %v1878, 8
      %v1919 = vmul.u32.u64.compose %v1918, %v1917
      %v1920 = vextract.low.u32 %v1919
      %v1921 = vextract.high.u32 %v1919
      %v1922 = vmul.u32.u64.compose %v1918, %v1913
      %v1923 = vextract.low.u32 %v1922
      %v1924 = vextract.high.u32 %v1922
      %v1925 = vmul.u32 %v1918, %v1909
      %v1926 = vadd.s32 %v1921, %v1923
      %vm1927 = vc.u32 %v1921, %v1923
      %v1928 = vadd.s32 %v1924, 1
      %v1929 = vsel %vm1927, %v1928, %v1924
      %v1930 = vadd.s32 %v1925, %v1929
      %v1931 = vadd.s32 %v1930, 536870912
      %v1932 = vshrl.u32 %v1931, 30
      %v1933 = vshll.u32 %v1932, 30
      %v1934 = vsub.s32 %v1930, %v1933
      %vm1935 = vcmp.lt.s32.totalorder %v1934, 0
      %v1936 = vsub.s32 0, %v1934
      %v1937 = vsel %vm1935, %v1936, %v1934
      %v1938 = vclz %v1937
      %v1939 = vsub.s32 %v1938, 2
      %vm1940 = vcmp.gt.s32.totalorder 0, %v1939
      %v1941 = vsel %vm1940, 0, %v1939
      %v1942 = vsub.s32 32, %v1941
      %v1943 = vshll.u32 %v1934, %v1941
      %v1944 = vshrl.u32 %v1926, %v1942
      %v1945 = vor.u32 %v1943, %v1944
      %v1946 = vsub.s32 4294967266, %v1941
      %v1947 = vadd.s32 %v1946, 127
      %v1948 = vshll.u32 %v1947, 23
      %v1949 = vor.u32 4788187, %v1948
      %v1950 = vand.u32 2147483647, %v1949
      %v1952 = vcvt.s32.f32 %v1945
      %v1953 = vmul.f32 %v1952, %v1950
      %v1954 = vxor.u32 %v1953, 2147483648
      %v1955 = vsel %vm1872, %v1954, %v1953
      %v1956 = vsub.s32 4, %v1932
      %v1957 = vsel %vm1872, %v1956, %v1932
      %v1958 = vsel %vm1871, %v1244, %v1955
      %v1959 = vsel %vm1871, 0, %v1957
      %v1960 = vcosq.f32.pop %v1958
      %v1961 = vsinq.f32.pop %v1958
      %vm1962 = vweird.f32 %v1244
      %v1963 = vadd.s32 %v1959, 3
      %v1964 = vand.u32 %v1963, 3
      %vm1965 = vcmp.lt.s32.totalorder %v1964, 2
      %vm1966 = vcmp.eq.s32.totalorder %v1964, 0
      %v1967 = vxor.u32 %v1961, 2147483648
      %v1968 = vsel %vm1966, %v1960, %v1967
      %vm1969 = vcmp.eq.s32.totalorder %v1964, 2
      %v1970 = vxor.u32 %v1960, 2147483648
      %v1971 = vsel %vm1969, %v1970, %v1961
      %v1972 = vsel %vm1965, %v1968, %v1971
      %v1973 = vsel %vm1962, nan, %v1972
      %v1974 = vand.u32 2147483647, %v1245
      %vm1975 = vcmp.le.f32.partialorder %v1974, 0.7853982
      %vm1976 = vcmp.lt.s32.totalorder %v1245, 0
      %v1977 = vand.u32 %v1245, 2139095040
      %v1978 = vshrl.u32 %v1977, 23
      %v1979 = vsub.s32 %v1978, 127
      %v1980 = vand.u32 2147483647, %v1245
      %v1981 = vand.u32 %v1980, 8388607
      %v1982 = vor.u32 %v1981, 8388608
      %v1983 = vsub.s32 0, %v1982
      %v1984 = vadd.s32 %v1979, 1
      %vm1985 = vcmp.gt.s32.totalorder %v1984, 0
      %v1986 = vsel %vm1985, %v1984, 0
      %v1987 = vshrl.u32 %v1986, 5
      %v1988 = vand.u32 %v1986, 31
      %v1989 = vsub.s32 32, %v1988
      %v1990 = vshrl.u32 683565275, %v1989
      %v1991 = vshll.u32 683565275, %v1988
      %v1992 = vshrl.u32 2475754826, %v1989
      %v1993 = vor.u32 %v1991, %v1992
      %v1994 = vshll.u32 2475754826, %v1988
      %v1995 = vshrl.u32 2131351028, %v1989
      %v1996 = vor.u32 %v1994, %v1995
      %v1997 = vshll.u32 2131351028, %v1988
      %v1998 = vshrl.u32 2102212464, %v1989
      %v1999 = vor.u32 %v1997, %v1998
      %v2000 = vshll.u32 2102212464, %v1988
      %v2001 = vshrl.u32 920167782, %v1989
      %v2002 = vor.u32 %v2000, %v2001
      %v2003 = vshll.u32 920167782, %v1988
      %v2004 = vshrl.u32 1326507024, %v1989
      %v2005 = vor.u32 %v2003, %v2004
      %vm2006 = vcmp.lt.s32.totalorder %v1987, 1
      %vm2007 = vcmp.lt.s32.totalorder %v1987, 2
      %vm2008 = vcmp.lt.s32.totalorder %v1987, 3
      %vm2009 = vcmp.lt.s32.totalorder %v1987, 4
      %v2010 = vsel %vm2006, %v1990, %v1993
      %v2011 = vsel %vm2009, %v1999, 2102212464
      %v2012 = vsel %vm2008, %v1996, %v2011
      %v2013 = vsel %vm2007, %v2010, %v2012
      %v2014 = vsel %vm2006, %v1993, %v1996
      %v2015 = vsel %vm2009, %v2002, 920167782
      %v2016 = vsel %vm2008, %v1999, %v2015
      %v2017 = vsel %vm2007, %v2014, %v2016
      %v2018 = vsel %vm2006, %v1996, %v1999
      %v2019 = vsel %vm2009, %v2005, 1326507024
      %v2020 = vsel %vm2008, %v2002, %v2019
      %v2021 = vsel %vm2007, %v2018, %v2020
      %v2022 = vshll.u32 %v1982, 8
      %v2023 = vmul.u32.u64.compose %v2022, %v2021
      %v2024 = vextract.low.u32 %v2023
      %v2025 = vextract.high.u32 %v2023
      %v2026 = vmul.u32.u64.compose %v2022, %v2017
      %v2027 = vextract.low.u32 %v2026
      %v2028 = vextract.high.u32 %v2026
      %v2029 = vmul.u32 %v2022, %v2013
      %v2030 = vadd.s32 %v2025, %v2027
      %vm2031 = vc.u32 %v2025, %v2027
      %v2032 = vadd.s32 %v2028, 1
      %v2033 = vsel %vm2031, %v2032, %v2028
      %v2034 = vadd.s32 %v2029, %v2033
      %v2035 = vadd.s32 %v2034, 536870912
      %v2036 = vshrl.u32 %v2035, 30
      %v2037 = vshll.u32 %v2036, 30
      %v2038 = vsub.s32 %v2034, %v2037
      %vm2039 = vcmp.lt.s32.totalorder %v2038, 0
      %v2040 = vsub.s32 0, %v2038
      %v2041 = vsel %vm2039, %v2040, %v2038
      %v2042 = vclz %v2041
      %v2043 = vsub.s32 %v2042, 2
      %vm2044 = vcmp.gt.s32.totalorder 0, %v2043
      %v2045 = vsel %vm2044, 0, %v2043
      %v2046 = vsub.s32 32, %v2045
      %v2047 = vshll.u32 %v2038, %v2045
      %v2048 = vshrl.u32 %v2030, %v2046
      %v2049 = vor.u32 %v2047, %v2048
      %v2050 = vsub.s32 4294967266, %v2045
      %v2051 = vadd.s32 %v2050, 127
      %v2052 = vshll.u32 %v2051, 23
      %v2053 = vor.u32 4788187, %v2052
      %v2054 = vand.u32 2147483647, %v2053
      %v2056 = vcvt.s32.f32 %v2049
      %v2057 = vmul.f32 %v2056, %v2054
      %v2058 = vxor.u32 %v2057, 2147483648
      %v2059 = vsel %vm1976, %v2058, %v2057
      %v2060 = vsub.s32 4, %v2036
      %v2061 = vsel %vm1976, %v2060, %v2036
      %v2062 = vsel %vm1975, %v1245, %v2059
      %v2063 = vsel %vm1975, 0, %v2061
      %v2064 = vcosq.f32.pop %v2062
      %v2065 = vsinq.f32.pop %v2062
      %vm2066 = vweird.f32 %v1245
      %v2067 = vadd.s32 %v2063, 3
      %v2068 = vand.u32 %v2067, 3
      %vm2069 = vcmp.lt.s32.totalorder %v2068, 2
      %vm2070 = vcmp.eq.s32.totalorder %v2068, 0
      %v2071 = vxor.u32 %v2065, 2147483648
      %v2072 = vsel %vm2070, %v2064, %v2071
      %vm2073 = vcmp.eq.s32.totalorder %v2068, 2
      %v2074 = vxor.u32 %v2064, 2147483648
      %v2075 = vsel %vm2073, %v2074, %v2065
      %v2076 = vsel %vm2069, %v2072, %v2075
      %v2077 = vsel %vm2066, nan, %v2076
      %2078 = vst [vmem:[%s271 + $0xc0] sm:$0xff] %v1349
      %2079 = vst [vmem:[%s271 + $0xc8] sm:$0xff] %v1453
      %2080 = vst [vmem:[%s271 + $0xd0] sm:$0xff] %v1557
      %2081 = vst [vmem:[%s271 + $0xd8] sm:$0xff] %v1661
      %2082 = vst [vmem:[%s271 + $0xe0] sm:$0xff] %v1765
      %2083 = vst [vmem:[%s271 + $0xe8] sm:$0xff] %v1869
      %2084 = vst [vmem:[%s271 + $0xf0] sm:$0xff] %v1973
      %2085 = vst [vmem:[%s271 + $0xf8] sm:$0xff] %v2077
      %s2086 = scalar_lea.vmem %s251, 2
      %v2087 = vld [vmem:[%s2086] ss:$4 sm:$0xf]
      %v2089 = vlaneseq
      %v2090 = vshrl.u32 %v2089, 7
      %v2091 = vsub.s32 0, %v2090
      %v2092 = vrot.slane %v2087, %v2091
      %v2093 = vlaneseq
      %v2094 = vshrl.u32 %v2093, 7
      %v2095 = vsub.s32 1, %v2094
      %v2096 = vrot.slane %v2087, %v2095
      %v2097 = vlaneseq
      %v2098 = vshrl.u32 %v2097, 7
      %v2099 = vsub.s32 2, %v2098
      %v2100 = vrot.slane %v2087, %v2099
      %v2101 = vlaneseq
      %v2102 = vshrl.u32 %v2101, 7
      %v2103 = vsub.s32 3, %v2102
      %v2104 = vrot.slane %v2087, %v2103
      %v2109 = vmul.f32 %v2092, %v334
      %v2110 = vmul.f32 %v2096, %v334
      %v2111 = vmul.f32 %v2100, %v334
      %v2112 = vmul.f32 %v2104, %v334
      %v2113 = vmul.f32 %v2092, %v339
      %v2114 = vmul.f32 %v2096, %v339
      %v2115 = vmul.f32 %v2100, %v339
      %v2116 = vmul.f32 %v2104, %v339
      %v2117 = vadd.f32 %v2109, %v352
      %v2118 = vadd.f32 %v2110, %v352
      %v2119 = vadd.f32 %v2111, %v352
      %v2120 = vadd.f32 %v2112, %v352
      %v2121 = vadd.f32 %v2113, %v357
      %v2122 = vadd.f32 %v2114, %v357
      %v2123 = vadd.f32 %v2115, %v357
      %v2124 = vadd.f32 %v2116, %v357
      %v2125 = vand.u32 2147483647, %v2117
      %vm2126 = vcmp.le.f32.partialorder %v2125, 0.7853982
      %vm2127 = vcmp.lt.s32.totalorder %v2117, 0
      %v2128 = vand.u32 %v2117, 2139095040
      %v2129 = vshrl.u32 %v2128, 23
      %v2130 = vsub.s32 %v2129, 127
      %v2131 = vand.u32 2147483647, %v2117
      %v2132 = vand.u32 %v2131, 8388607
      %v2133 = vor.u32 %v2132, 8388608
      %v2134 = vsub.s32 0, %v2133
      %v2135 = vadd.s32 %v2130, 1
      %vm2136 = vcmp.gt.s32.totalorder %v2135, 0
      %v2137 = vsel %vm2136, %v2135, 0
      %v2138 = vshrl.u32 %v2137, 5
      %v2139 = vand.u32 %v2137, 31
      %v2140 = vsub.s32 32, %v2139
      %v2141 = vshrl.u32 683565275, %v2140
      %v2142 = vshll.u32 683565275, %v2139
      %v2143 = vshrl.u32 2475754826, %v2140
      %v2144 = vor.u32 %v2142, %v2143
      %v2145 = vshll.u32 2475754826, %v2139
      %v2146 = vshrl.u32 2131351028, %v2140
      %v2147 = vor.u32 %v2145, %v2146
      %v2148 = vshll.u32 2131351028, %v2139
      %v2149 = vshrl.u32 2102212464, %v2140
      %v2150 = vor.u32 %v2148, %v2149
      %v2151 = vshll.u32 2102212464, %v2139
      %v2152 = vshrl.u32 920167782, %v2140
      %v2153 = vor.u32 %v2151, %v2152
      %v2154 = vshll.u32 920167782, %v2139
      %v2155 = vshrl.u32 1326507024, %v2140
      %v2156 = vor.u32 %v2154, %v2155
      %vm2157 = vcmp.lt.s32.totalorder %v2138, 1
      %vm2158 = vcmp.lt.s32.totalorder %v2138, 2
      %vm2159 = vcmp.lt.s32.totalorder %v2138, 3
      %vm2160 = vcmp.lt.s32.totalorder %v2138, 4
      %v2161 = vsel %vm2157, %v2141, %v2144
      %v2162 = vsel %vm2160, %v2150, 2102212464
      %v2163 = vsel %vm2159, %v2147, %v2162
      %v2164 = vsel %vm2158, %v2161, %v2163
      %v2165 = vsel %vm2157, %v2144, %v2147
      %v2166 = vsel %vm2160, %v2153, 920167782
      %v2167 = vsel %vm2159, %v2150, %v2166
      %v2168 = vsel %vm2158, %v2165, %v2167
      %v2169 = vsel %vm2157, %v2147, %v2150
      %v2170 = vsel %vm2160, %v2156, 1326507024
      %v2171 = vsel %vm2159, %v2153, %v2170
      %v2172 = vsel %vm2158, %v2169, %v2171
      %v2173 = vshll.u32 %v2133, 8
      %v2174 = vmul.u32.u64.compose %v2173, %v2172
      %v2175 = vextract.low.u32 %v2174
      %v2176 = vextract.high.u32 %v2174
      %v2177 = vmul.u32.u64.compose %v2173, %v2168
      %v2178 = vextract.low.u32 %v2177
      %v2179 = vextract.high.u32 %v2177
      %v2180 = vmul.u32 %v2173, %v2164
      %v2181 = vadd.s32 %v2176, %v2178
      %vm2182 = vc.u32 %v2176, %v2178
      %v2183 = vadd.s32 %v2179, 1
      %v2184 = vsel %vm2182, %v2183, %v2179
      %v2185 = vadd.s32 %v2180, %v2184
      %v2186 = vadd.s32 %v2185, 536870912
      %v2187 = vshrl.u32 %v2186, 30
      %v2188 = vshll.u32 %v2187, 30
      %v2189 = vsub.s32 %v2185, %v2188
      %vm2190 = vcmp.lt.s32.totalorder %v2189, 0
      %v2191 = vsub.s32 0, %v2189
      %v2192 = vsel %vm2190, %v2191, %v2189
      %v2193 = vclz %v2192
      %v2194 = vsub.s32 %v2193, 2
      %vm2195 = vcmp.gt.s32.totalorder 0, %v2194
      %v2196 = vsel %vm2195, 0, %v2194
      %v2197 = vsub.s32 32, %v2196
      %v2198 = vshll.u32 %v2189, %v2196
      %v2199 = vshrl.u32 %v2181, %v2197
      %v2200 = vor.u32 %v2198, %v2199
      %v2201 = vsub.s32 4294967266, %v2196
      %v2202 = vadd.s32 %v2201, 127
      %v2203 = vshll.u32 %v2202, 23
      %v2204 = vor.u32 4788187, %v2203
      %v2205 = vand.u32 2147483647, %v2204
      %v2207 = vcvt.s32.f32 %v2200
      %v2208 = vmul.f32 %v2207, %v2205
      %v2209 = vxor.u32 %v2208, 2147483648
      %v2210 = vsel %vm2127, %v2209, %v2208
      %v2211 = vsub.s32 4, %v2187
      %v2212 = vsel %vm2127, %v2211, %v2187
      %v2213 = vsel %vm2126, %v2117, %v2210
      %v2214 = vsel %vm2126, 0, %v2212
      %v2215 = vcosq.f32.pop %v2213
      %v2216 = vsinq.f32.pop %v2213
      %vm2217 = vweird.f32 %v2117
      %v2218 = vadd.s32 %v2214, 3
      %v2219 = vand.u32 %v2218, 3
      %vm2220 = vcmp.lt.s32.totalorder %v2219, 2
      %vm2221 = vcmp.eq.s32.totalorder %v2219, 0
      %v2222 = vxor.u32 %v2216, 2147483648
      %v2223 = vsel %vm2221, %v2215, %v2222
      %vm2224 = vcmp.eq.s32.totalorder %v2219, 2
      %v2225 = vxor.u32 %v2215, 2147483648
      %v2226 = vsel %vm2224, %v2225, %v2216
      %v2227 = vsel %vm2220, %v2223, %v2226
      %v2228 = vsel %vm2217, nan, %v2227
      %v2229 = vand.u32 2147483647, %v2118
      %vm2230 = vcmp.le.f32.partialorder %v2229, 0.7853982
      %vm2231 = vcmp.lt.s32.totalorder %v2118, 0
      %v2232 = vand.u32 %v2118, 2139095040
      %v2233 = vshrl.u32 %v2232, 23
      %v2234 = vsub.s32 %v2233, 127
      %v2235 = vand.u32 2147483647, %v2118
      %v2236 = vand.u32 %v2235, 8388607
      %v2237 = vor.u32 %v2236, 8388608
      %v2238 = vsub.s32 0, %v2237
      %v2239 = vadd.s32 %v2234, 1
      %vm2240 = vcmp.gt.s32.totalorder %v2239, 0
      %v2241 = vsel %vm2240, %v2239, 0
      %v2242 = vshrl.u32 %v2241, 5
      %v2243 = vand.u32 %v2241, 31
      %v2244 = vsub.s32 32, %v2243
      %v2245 = vshrl.u32 683565275, %v2244
      %v2246 = vshll.u32 683565275, %v2243
      %v2247 = vshrl.u32 2475754826, %v2244
      %v2248 = vor.u32 %v2246, %v2247
      %v2249 = vshll.u32 2475754826, %v2243
      %v2250 = vshrl.u32 2131351028, %v2244
      %v2251 = vor.u32 %v2249, %v2250
      %v2252 = vshll.u32 2131351028, %v2243
      %v2253 = vshrl.u32 2102212464, %v2244
      %v2254 = vor.u32 %v2252, %v2253
      %v2255 = vshll.u32 2102212464, %v2243
      %v2256 = vshrl.u32 920167782, %v2244
      %v2257 = vor.u32 %v2255, %v2256
      %v2258 = vshll.u32 920167782, %v2243
      %v2259 = vshrl.u32 1326507024, %v2244
      %v2260 = vor.u32 %v2258, %v2259
      %vm2261 = vcmp.lt.s32.totalorder %v2242, 1
      %vm2262 = vcmp.lt.s32.totalorder %v2242, 2
      %vm2263 = vcmp.lt.s32.totalorder %v2242, 3
      %vm2264 = vcmp.lt.s32.totalorder %v2242, 4
      %v2265 = vsel %vm2261, %v2245, %v2248
      %v2266 = vsel %vm2264, %v2254, 2102212464
      %v2267 = vsel %vm2263, %v2251, %v2266
      %v2268 = vsel %vm2262, %v2265, %v2267
      %v2269 = vsel %vm2261, %v2248, %v2251
      %v2270 = vsel %vm2264, %v2257, 920167782
      %v2271 = vsel %vm2263, %v2254, %v2270
      %v2272 = vsel %vm2262, %v2269, %v2271
      %v2273 = vsel %vm2261, %v2251, %v2254
      %v2274 = vsel %vm2264, %v2260, 1326507024
      %v2275 = vsel %vm2263, %v2257, %v2274
      %v2276 = vsel %vm2262, %v2273, %v2275
      %v2277 = vshll.u32 %v2237, 8
      %v2278 = vmul.u32.u64.compose %v2277, %v2276
      %v2279 = vextract.low.u32 %v2278
      %v2280 = vextract.high.u32 %v2278
      %v2281 = vmul.u32.u64.compose %v2277, %v2272
      %v2282 = vextract.low.u32 %v2281
      %v2283 = vextract.high.u32 %v2281
      %v2284 = vmul.u32 %v2277, %v2268
      %v2285 = vadd.s32 %v2280, %v2282
      %vm2286 = vc.u32 %v2280, %v2282
      %v2287 = vadd.s32 %v2283, 1
      %v2288 = vsel %vm2286, %v2287, %v2283
      %v2289 = vadd.s32 %v2284, %v2288
      %v2290 = vadd.s32 %v2289, 536870912
      %v2291 = vshrl.u32 %v2290, 30
      %v2292 = vshll.u32 %v2291, 30
      %v2293 = vsub.s32 %v2289, %v2292
      %vm2294 = vcmp.lt.s32.totalorder %v2293, 0
      %v2295 = vsub.s32 0, %v2293
      %v2296 = vsel %vm2294, %v2295, %v2293
      %v2297 = vclz %v2296
      %v2298 = vsub.s32 %v2297, 2
      %vm2299 = vcmp.gt.s32.totalorder 0, %v2298
      %v2300 = vsel %vm2299, 0, %v2298
      %v2301 = vsub.s32 32, %v2300
      %v2302 = vshll.u32 %v2293, %v2300
      %v2303 = vshrl.u32 %v2285, %v2301
      %v2304 = vor.u32 %v2302, %v2303
      %v2305 = vsub.s32 4294967266, %v2300
      %v2306 = vadd.s32 %v2305, 127
      %v2307 = vshll.u32 %v2306, 23
      %v2308 = vor.u32 4788187, %v2307
      %v2309 = vand.u32 2147483647, %v2308
      %v2311 = vcvt.s32.f32 %v2304
      %v2312 = vmul.f32 %v2311, %v2309
      %v2313 = vxor.u32 %v2312, 2147483648
      %v2314 = vsel %vm2231, %v2313, %v2312
      %v2315 = vsub.s32 4, %v2291
      %v2316 = vsel %vm2231, %v2315, %v2291
      %v2317 = vsel %vm2230, %v2118, %v2314
      %v2318 = vsel %vm2230, 0, %v2316
      %v2319 = vcosq.f32.pop %v2317
      %v2320 = vsinq.f32.pop %v2317
      %vm2321 = vweird.f32 %v2118
      %v2322 = vadd.s32 %v2318, 3
      %v2323 = vand.u32 %v2322, 3
      %vm2324 = vcmp.lt.s32.totalorder %v2323, 2
      %vm2325 = vcmp.eq.s32.totalorder %v2323, 0
      %v2326 = vxor.u32 %v2320, 2147483648
      %v2327 = vsel %vm2325, %v2319, %v2326
      %vm2328 = vcmp.eq.s32.totalorder %v2323, 2
      %v2329 = vxor.u32 %v2319, 2147483648
      %v2330 = vsel %vm2328, %v2329, %v2320
      %v2331 = vsel %vm2324, %v2327, %v2330
      %v2332 = vsel %vm2321, nan, %v2331
      %v2333 = vand.u32 2147483647, %v2119
      %vm2334 = vcmp.le.f32.partialorder %v2333, 0.7853982
      %vm2335 = vcmp.lt.s32.totalorder %v2119, 0
      %v2336 = vand.u32 %v2119, 2139095040
      %v2337 = vshrl.u32 %v2336, 23
      %v2338 = vsub.s32 %v2337, 127
      %v2339 = vand.u32 2147483647, %v2119
      %v2340 = vand.u32 %v2339, 8388607
      %v2341 = vor.u32 %v2340, 8388608
      %v2342 = vsub.s32 0, %v2341
      %v2343 = vadd.s32 %v2338, 1
      %vm2344 = vcmp.gt.s32.totalorder %v2343, 0
      %v2345 = vsel %vm2344, %v2343, 0
      %v2346 = vshrl.u32 %v2345, 5
      %v2347 = vand.u32 %v2345, 31
      %v2348 = vsub.s32 32, %v2347
      %v2349 = vshrl.u32 683565275, %v2348
      %v2350 = vshll.u32 683565275, %v2347
      %v2351 = vshrl.u32 2475754826, %v2348
      %v2352 = vor.u32 %v2350, %v2351
      %v2353 = vshll.u32 2475754826, %v2347
      %v2354 = vshrl.u32 2131351028, %v2348
      %v2355 = vor.u32 %v2353, %v2354
      %v2356 = vshll.u32 2131351028, %v2347
      %v2357 = vshrl.u32 2102212464, %v2348
      %v2358 = vor.u32 %v2356, %v2357
      %v2359 = vshll.u32 2102212464, %v2347
      %v2360 = vshrl.u32 920167782, %v2348
      %v2361 = vor.u32 %v2359, %v2360
      %v2362 = vshll.u32 920167782, %v2347
      %v2363 = vshrl.u32 1326507024, %v2348
      %v2364 = vor.u32 %v2362, %v2363
      %vm2365 = vcmp.lt.s32.totalorder %v2346, 1
      %vm2366 = vcmp.lt.s32.totalorder %v2346, 2
      %vm2367 = vcmp.lt.s32.totalorder %v2346, 3
      %vm2368 = vcmp.lt.s32.totalorder %v2346, 4
      %v2369 = vsel %vm2365, %v2349, %v2352
      %v2370 = vsel %vm2368, %v2358, 2102212464
      %v2371 = vsel %vm2367, %v2355, %v2370
      %v2372 = vsel %vm2366, %v2369, %v2371
      %v2373 = vsel %vm2365, %v2352, %v2355
      %v2374 = vsel %vm2368, %v2361, 920167782
      %v2375 = vsel %vm2367, %v2358, %v2374
      %v2376 = vsel %vm2366, %v2373, %v2375
      %v2377 = vsel %vm2365, %v2355, %v2358
      %v2378 = vsel %vm2368, %v2364, 1326507024
      %v2379 = vsel %vm2367, %v2361, %v2378
      %v2380 = vsel %vm2366, %v2377, %v2379
      %v2381 = vshll.u32 %v2341, 8
      %v2382 = vmul.u32.u64.compose %v2381, %v2380
      %v2383 = vextract.low.u32 %v2382
      %v2384 = vextract.high.u32 %v2382
      %v2385 = vmul.u32.u64.compose %v2381, %v2376
      %v2386 = vextract.low.u32 %v2385
      %v2387 = vextract.high.u32 %v2385
      %v2388 = vmul.u32 %v2381, %v2372
      %v2389 = vadd.s32 %v2384, %v2386
      %vm2390 = vc.u32 %v2384, %v2386
      %v2391 = vadd.s32 %v2387, 1
      %v2392 = vsel %vm2390, %v2391, %v2387
      %v2393 = vadd.s32 %v2388, %v2392
      %v2394 = vadd.s32 %v2393, 536870912
      %v2395 = vshrl.u32 %v2394, 30
      %v2396 = vshll.u32 %v2395, 30
      %v2397 = vsub.s32 %v2393, %v2396
      %vm2398 = vcmp.lt.s32.totalorder %v2397, 0
      %v2399 = vsub.s32 0, %v2397
      %v2400 = vsel %vm2398, %v2399, %v2397
      %v2401 = vclz %v2400
      %v2402 = vsub.s32 %v2401, 2
      %vm2403 = vcmp.gt.s32.totalorder 0, %v2402
      %v2404 = vsel %vm2403, 0, %v2402
      %v2405 = vsub.s32 32, %v2404
      %v2406 = vshll.u32 %v2397, %v2404
      %v2407 = vshrl.u32 %v2389, %v2405
      %v2408 = vor.u32 %v2406, %v2407
      %v2409 = vsub.s32 4294967266, %v2404
      %v2410 = vadd.s32 %v2409, 127
      %v2411 = vshll.u32 %v2410, 23
      %v2412 = vor.u32 4788187, %v2411
      %v2413 = vand.u32 2147483647, %v2412
      %v2415 = vcvt.s32.f32 %v2408
      %v2416 = vmul.f32 %v2415, %v2413
      %v2417 = vxor.u32 %v2416, 2147483648
      %v2418 = vsel %vm2335, %v2417, %v2416
      %v2419 = vsub.s32 4, %v2395
      %v2420 = vsel %vm2335, %v2419, %v2395
      %v2421 = vsel %vm2334, %v2119, %v2418
      %v2422 = vsel %vm2334, 0, %v2420
      %v2423 = vcosq.f32.pop %v2421
      %v2424 = vsinq.f32.pop %v2421
      %vm2425 = vweird.f32 %v2119
      %v2426 = vadd.s32 %v2422, 3
      %v2427 = vand.u32 %v2426, 3
      %vm2428 = vcmp.lt.s32.totalorder %v2427, 2
      %vm2429 = vcmp.eq.s32.totalorder %v2427, 0
      %v2430 = vxor.u32 %v2424, 2147483648
      %v2431 = vsel %vm2429, %v2423, %v2430
      %vm2432 = vcmp.eq.s32.totalorder %v2427, 2
      %v2433 = vxor.u32 %v2423, 2147483648
      %v2434 = vsel %vm2432, %v2433, %v2424
      %v2435 = vsel %vm2428, %v2431, %v2434
      %v2436 = vsel %vm2425, nan, %v2435
      %v2437 = vand.u32 2147483647, %v2120
      %vm2438 = vcmp.le.f32.partialorder %v2437, 0.7853982
      %vm2439 = vcmp.lt.s32.totalorder %v2120, 0
      %v2440 = vand.u32 %v2120, 2139095040
      %v2441 = vshrl.u32 %v2440, 23
      %v2442 = vsub.s32 %v2441, 127
      %v2443 = vand.u32 2147483647, %v2120
      %v2444 = vand.u32 %v2443, 8388607
      %v2445 = vor.u32 %v2444, 8388608
      %v2446 = vsub.s32 0, %v2445
      %v2447 = vadd.s32 %v2442, 1
      %vm2448 = vcmp.gt.s32.totalorder %v2447, 0
      %v2449 = vsel %vm2448, %v2447, 0
      %v2450 = vshrl.u32 %v2449, 5
      %v2451 = vand.u32 %v2449, 31
      %v2452 = vsub.s32 32, %v2451
      %v2453 = vshrl.u32 683565275, %v2452
      %v2454 = vshll.u32 683565275, %v2451
      %v2455 = vshrl.u32 2475754826, %v2452
      %v2456 = vor.u32 %v2454, %v2455
      %v2457 = vshll.u32 2475754826, %v2451
      %v2458 = vshrl.u32 2131351028, %v2452
      %v2459 = vor.u32 %v2457, %v2458
      %v2460 = vshll.u32 2131351028, %v2451
      %v2461 = vshrl.u32 2102212464, %v2452
      %v2462 = vor.u32 %v2460, %v2461
      %v2463 = vshll.u32 2102212464, %v2451
      %v2464 = vshrl.u32 920167782, %v2452
      %v2465 = vor.u32 %v2463, %v2464
      %v2466 = vshll.u32 920167782, %v2451
      %v2467 = vshrl.u32 1326507024, %v2452
      %v2468 = vor.u32 %v2466, %v2467
      %vm2469 = vcmp.lt.s32.totalorder %v2450, 1
      %vm2470 = vcmp.lt.s32.totalorder %v2450, 2
      %vm2471 = vcmp.lt.s32.totalorder %v2450, 3
      %vm2472 = vcmp.lt.s32.totalorder %v2450, 4
      %v2473 = vsel %vm2469, %v2453, %v2456
      %v2474 = vsel %vm2472, %v2462, 2102212464
      %v2475 = vsel %vm2471, %v2459, %v2474
      %v2476 = vsel %vm2470, %v2473, %v2475
      %v2477 = vsel %vm2469, %v2456, %v2459
      %v2478 = vsel %vm2472, %v2465, 920167782
      %v2479 = vsel %vm2471, %v2462, %v2478
      %v2480 = vsel %vm2470, %v2477, %v2479
      %v2481 = vsel %vm2469, %v2459, %v2462
      %v2482 = vsel %vm2472, %v2468, 1326507024
      %v2483 = vsel %vm2471, %v2465, %v2482
      %v2484 = vsel %vm2470, %v2481, %v2483
      %v2485 = vshll.u32 %v2445, 8
      %v2486 = vmul.u32.u64.compose %v2485, %v2484
      %v2487 = vextract.low.u32 %v2486
      %v2488 = vextract.high.u32 %v2486
      %v2489 = vmul.u32.u64.compose %v2485, %v2480
      %v2490 = vextract.low.u32 %v2489
      %v2491 = vextract.high.u32 %v2489
      %v2492 = vmul.u32 %v2485, %v2476
      %v2493 = vadd.s32 %v2488, %v2490
      %vm2494 = vc.u32 %v2488, %v2490
      %v2495 = vadd.s32 %v2491, 1
      %v2496 = vsel %vm2494, %v2495, %v2491
      %v2497 = vadd.s32 %v2492, %v2496
      %v2498 = vadd.s32 %v2497, 536870912
      %v2499 = vshrl.u32 %v2498, 30
      %v2500 = vshll.u32 %v2499, 30
      %v2501 = vsub.s32 %v2497, %v2500
      %vm2502 = vcmp.lt.s32.totalorder %v2501, 0
      %v2503 = vsub.s32 0, %v2501
      %v2504 = vsel %vm2502, %v2503, %v2501
      %v2505 = vclz %v2504
      %v2506 = vsub.s32 %v2505, 2
      %vm2507 = vcmp.gt.s32.totalorder 0, %v2506
      %v2508 = vsel %vm2507, 0, %v2506
      %v2509 = vsub.s32 32, %v2508
      %v2510 = vshll.u32 %v2501, %v2508
      %v2511 = vshrl.u32 %v2493, %v2509
      %v2512 = vor.u32 %v2510, %v2511
      %v2513 = vsub.s32 4294967266, %v2508
      %v2514 = vadd.s32 %v2513, 127
      %v2515 = vshll.u32 %v2514, 23
      %v2516 = vor.u32 4788187, %v2515
      %v2517 = vand.u32 2147483647, %v2516
      %v2519 = vcvt.s32.f32 %v2512
      %v2520 = vmul.f32 %v2519, %v2517
      %v2521 = vxor.u32 %v2520, 2147483648
      %v2522 = vsel %vm2439, %v2521, %v2520
      %v2523 = vsub.s32 4, %v2499
      %v2524 = vsel %vm2439, %v2523, %v2499
      %v2525 = vsel %vm2438, %v2120, %v2522
      %v2526 = vsel %vm2438, 0, %v2524
      %v2527 = vcosq.f32.pop %v2525
      %v2528 = vsinq.f32.pop %v2525
      %vm2529 = vweird.f32 %v2120
      %v2530 = vadd.s32 %v2526, 3
      %v2531 = vand.u32 %v2530, 3
      %vm2532 = vcmp.lt.s32.totalorder %v2531, 2
      %vm2533 = vcmp.eq.s32.totalorder %v2531, 0
      %v2534 = vxor.u32 %v2528, 2147483648
      %v2535 = vsel %vm2533, %v2527, %v2534
      %vm2536 = vcmp.eq.s32.totalorder %v2531, 2
      %v2537 = vxor.u32 %v2527, 2147483648
      %v2538 = vsel %vm2536, %v2537, %v2528
      %v2539 = vsel %vm2532, %v2535, %v2538
      %v2540 = vsel %vm2529, nan, %v2539
      %v2541 = vand.u32 2147483647, %v2121
      %vm2542 = vcmp.le.f32.partialorder %v2541, 0.7853982
      %vm2543 = vcmp.lt.s32.totalorder %v2121, 0
      %v2544 = vand.u32 %v2121, 2139095040
      %v2545 = vshrl.u32 %v2544, 23
      %v2546 = vsub.s32 %v2545, 127
      %v2547 = vand.u32 2147483647, %v2121
      %v2548 = vand.u32 %v2547, 8388607
      %v2549 = vor.u32 %v2548, 8388608
      %v2550 = vsub.s32 0, %v2549
      %v2551 = vadd.s32 %v2546, 1
      %vm2552 = vcmp.gt.s32.totalorder %v2551, 0
      %v2553 = vsel %vm2552, %v2551, 0
      %v2554 = vshrl.u32 %v2553, 5
      %v2555 = vand.u32 %v2553, 31
      %v2556 = vsub.s32 32, %v2555
      %v2557 = vshrl.u32 683565275, %v2556
      %v2558 = vshll.u32 683565275, %v2555
      %v2559 = vshrl.u32 2475754826, %v2556
      %v2560 = vor.u32 %v2558, %v2559
      %v2561 = vshll.u32 2475754826, %v2555
      %v2562 = vshrl.u32 2131351028, %v2556
      %v2563 = vor.u32 %v2561, %v2562
      %v2564 = vshll.u32 2131351028, %v2555
      %v2565 = vshrl.u32 2102212464, %v2556
      %v2566 = vor.u32 %v2564, %v2565
      %v2567 = vshll.u32 2102212464, %v2555
      %v2568 = vshrl.u32 920167782, %v2556
      %v2569 = vor.u32 %v2567, %v2568
      %v2570 = vshll.u32 920167782, %v2555
      %v2571 = vshrl.u32 1326507024, %v2556
      %v2572 = vor.u32 %v2570, %v2571
      %vm2573 = vcmp.lt.s32.totalorder %v2554, 1
      %vm2574 = vcmp.lt.s32.totalorder %v2554, 2
      %vm2575 = vcmp.lt.s32.totalorder %v2554, 3
      %vm2576 = vcmp.lt.s32.totalorder %v2554, 4
      %v2577 = vsel %vm2573, %v2557, %v2560
      %v2578 = vsel %vm2576, %v2566, 2102212464
      %v2579 = vsel %vm2575, %v2563, %v2578
      %v2580 = vsel %vm2574, %v2577, %v2579
      %v2581 = vsel %vm2573, %v2560, %v2563
      %v2582 = vsel %vm2576, %v2569, 920167782
      %v2583 = vsel %vm2575, %v2566, %v2582
      %v2584 = vsel %vm2574, %v2581, %v2583
      %v2585 = vsel %vm2573, %v2563, %v2566
      %v2586 = vsel %vm2576, %v2572, 1326507024
      %v2587 = vsel %vm2575, %v2569, %v2586
      %v2588 = vsel %vm2574, %v2585, %v2587
      %v2589 = vshll.u32 %v2549, 8
      %v2590 = vmul.u32.u64.compose %v2589, %v2588
      %v2591 = vextract.low.u32 %v2590
      %v2592 = vextract.high.u32 %v2590
      %v2593 = vmul.u32.u64.compose %v2589, %v2584
      %v2594 = vextract.low.u32 %v2593
      %v2595 = vextract.high.u32 %v2593
      %v2596 = vmul.u32 %v2589, %v2580
      %v2597 = vadd.s32 %v2592, %v2594
      %vm2598 = vc.u32 %v2592, %v2594
      %v2599 = vadd.s32 %v2595, 1
      %v2600 = vsel %vm2598, %v2599, %v2595
      %v2601 = vadd.s32 %v2596, %v2600
      %v2602 = vadd.s32 %v2601, 536870912
      %v2603 = vshrl.u32 %v2602, 30
      %v2604 = vshll.u32 %v2603, 30
      %v2605 = vsub.s32 %v2601, %v2604
      %vm2606 = vcmp.lt.s32.totalorder %v2605, 0
      %v2607 = vsub.s32 0, %v2605
      %v2608 = vsel %vm2606, %v2607, %v2605
      %v2609 = vclz %v2608
      %v2610 = vsub.s32 %v2609, 2
      %vm2611 = vcmp.gt.s32.totalorder 0, %v2610
      %v2612 = vsel %vm2611, 0, %v2610
      %v2613 = vsub.s32 32, %v2612
      %v2614 = vshll.u32 %v2605, %v2612
      %v2615 = vshrl.u32 %v2597, %v2613
      %v2616 = vor.u32 %v2614, %v2615
      %v2617 = vsub.s32 4294967266, %v2612
      %v2618 = vadd.s32 %v2617, 127
      %v2619 = vshll.u32 %v2618, 23
      %v2620 = vor.u32 4788187, %v2619
      %v2621 = vand.u32 2147483647, %v2620
      %v2623 = vcvt.s32.f32 %v2616
      %v2624 = vmul.f32 %v2623, %v2621
      %v2625 = vxor.u32 %v2624, 2147483648
      %v2626 = vsel %vm2543, %v2625, %v2624
      %v2627 = vsub.s32 4, %v2603
      %v2628 = vsel %vm2543, %v2627, %v2603
      %v2629 = vsel %vm2542, %v2121, %v2626
      %v2630 = vsel %vm2542, 0, %v2628
      %v2631 = vcosq.f32.pop %v2629
      %v2632 = vsinq.f32.pop %v2629
      %vm2633 = vweird.f32 %v2121
      %v2634 = vadd.s32 %v2630, 3
      %v2635 = vand.u32 %v2634, 3
      %vm2636 = vcmp.lt.s32.totalorder %v2635, 2
      %vm2637 = vcmp.eq.s32.totalorder %v2635, 0
      %v2638 = vxor.u32 %v2632, 2147483648
      %v2639 = vsel %vm2637, %v2631, %v2638
      %vm2640 = vcmp.eq.s32.totalorder %v2635, 2
      %v2641 = vxor.u32 %v2631, 2147483648
      %v2642 = vsel %vm2640, %v2641, %v2632
      %v2643 = vsel %vm2636, %v2639, %v2642
      %v2644 = vsel %vm2633, nan, %v2643
      %v2645 = vand.u32 2147483647, %v2122
      %vm2646 = vcmp.le.f32.partialorder %v2645, 0.7853982
      %vm2647 = vcmp.lt.s32.totalorder %v2122, 0
      %v2648 = vand.u32 %v2122, 2139095040
      %v2649 = vshrl.u32 %v2648, 23
      %v2650 = vsub.s32 %v2649, 127
      %v2651 = vand.u32 2147483647, %v2122
      %v2652 = vand.u32 %v2651, 8388607
      %v2653 = vor.u32 %v2652, 8388608
      %v2654 = vsub.s32 0, %v2653
      %v2655 = vadd.s32 %v2650, 1
      %vm2656 = vcmp.gt.s32.totalorder %v2655, 0
      %v2657 = vsel %vm2656, %v2655, 0
      %v2658 = vshrl.u32 %v2657, 5
      %v2659 = vand.u32 %v2657, 31
      %v2660 = vsub.s32 32, %v2659
      %v2661 = vshrl.u32 683565275, %v2660
      %v2662 = vshll.u32 683565275, %v2659
      %v2663 = vshrl.u32 2475754826, %v2660
      %v2664 = vor.u32 %v2662, %v2663
      %v2665 = vshll.u32 2475754826, %v2659
      %v2666 = vshrl.u32 2131351028, %v2660
      %v2667 = vor.u32 %v2665, %v2666
      %v2668 = vshll.u32 2131351028, %v2659
      %v2669 = vshrl.u32 2102212464, %v2660
      %v2670 = vor.u32 %v2668, %v2669
      %v2671 = vshll.u32 2102212464, %v2659
      %v2672 = vshrl.u32 920167782, %v2660
      %v2673 = vor.u32 %v2671, %v2672
      %v2674 = vshll.u32 920167782, %v2659
      %v2675 = vshrl.u32 1326507024, %v2660
      %v2676 = vor.u32 %v2674, %v2675
      %vm2677 = vcmp.lt.s32.totalorder %v2658, 1
      %vm2678 = vcmp.lt.s32.totalorder %v2658, 2
      %vm2679 = vcmp.lt.s32.totalorder %v2658, 3
      %vm2680 = vcmp.lt.s32.totalorder %v2658, 4
      %v2681 = vsel %vm2677, %v2661, %v2664
      %v2682 = vsel %vm2680, %v2670, 2102212464
      %v2683 = vsel %vm2679, %v2667, %v2682
      %v2684 = vsel %vm2678, %v2681, %v2683
      %v2685 = vsel %vm2677, %v2664, %v2667
      %v2686 = vsel %vm2680, %v2673, 920167782
      %v2687 = vsel %vm2679, %v2670, %v2686
      %v2688 = vsel %vm2678, %v2685, %v2687
      %v2689 = vsel %vm2677, %v2667, %v2670
      %v2690 = vsel %vm2680, %v2676, 1326507024
      %v2691 = vsel %vm2679, %v2673, %v2690
      %v2692 = vsel %vm2678, %v2689, %v2691
      %v2693 = vshll.u32 %v2653, 8
      %v2694 = vmul.u32.u64.compose %v2693, %v2692
      %v2695 = vextract.low.u32 %v2694
      %v2696 = vextract.high.u32 %v2694
      %v2697 = vmul.u32.u64.compose %v2693, %v2688
      %v2698 = vextract.low.u32 %v2697
      %v2699 = vextract.high.u32 %v2697
      %v2700 = vmul.u32 %v2693, %v2684
      %v2701 = vadd.s32 %v2696, %v2698
      %vm2702 = vc.u32 %v2696, %v2698
      %v2703 = vadd.s32 %v2699, 1
      %v2704 = vsel %vm2702, %v2703, %v2699
      %v2705 = vadd.s32 %v2700, %v2704
      %v2706 = vadd.s32 %v2705, 536870912
      %v2707 = vshrl.u32 %v2706, 30
      %v2708 = vshll.u32 %v2707, 30
      %v2709 = vsub.s32 %v2705, %v2708
      %vm2710 = vcmp.lt.s32.totalorder %v2709, 0
      %v2711 = vsub.s32 0, %v2709
      %v2712 = vsel %vm2710, %v2711, %v2709
      %v2713 = vclz %v2712
      %v2714 = vsub.s32 %v2713, 2
      %vm2715 = vcmp.gt.s32.totalorder 0, %v2714
      %v2716 = vsel %vm2715, 0, %v2714
      %v2717 = vsub.s32 32, %v2716
      %v2718 = vshll.u32 %v2709, %v2716
      %v2719 = vshrl.u32 %v2701, %v2717
      %v2720 = vor.u32 %v2718, %v2719
      %v2721 = vsub.s32 4294967266, %v2716
      %v2722 = vadd.s32 %v2721, 127
      %v2723 = vshll.u32 %v2722, 23
      %v2724 = vor.u32 4788187, %v2723
      %v2725 = vand.u32 2147483647, %v2724
      %v2727 = vcvt.s32.f32 %v2720
      %v2728 = vmul.f32 %v2727, %v2725
      %v2729 = vxor.u32 %v2728, 2147483648
      %v2730 = vsel %vm2647, %v2729, %v2728
      %v2731 = vsub.s32 4, %v2707
      %v2732 = vsel %vm2647, %v2731, %v2707
      %v2733 = vsel %vm2646, %v2122, %v2730
      %v2734 = vsel %vm2646, 0, %v2732
      %v2735 = vcosq.f32.pop %v2733
      %v2736 = vsinq.f32.pop %v2733
      %vm2737 = vweird.f32 %v2122
      %v2738 = vadd.s32 %v2734, 3
      %v2739 = vand.u32 %v2738, 3
      %vm2740 = vcmp.lt.s32.totalorder %v2739, 2
      %vm2741 = vcmp.eq.s32.totalorder %v2739, 0
      %v2742 = vxor.u32 %v2736, 2147483648
      %v2743 = vsel %vm2741, %v2735, %v2742
      %vm2744 = vcmp.eq.s32.totalorder %v2739, 2
      %v2745 = vxor.u32 %v2735, 2147483648
      %v2746 = vsel %vm2744, %v2745, %v2736
      %v2747 = vsel %vm2740, %v2743, %v2746
      %v2748 = vsel %vm2737, nan, %v2747
      %v2749 = vand.u32 2147483647, %v2123
      %vm2750 = vcmp.le.f32.partialorder %v2749, 0.7853982
      %vm2751 = vcmp.lt.s32.totalorder %v2123, 0
      %v2752 = vand.u32 %v2123, 2139095040
      %v2753 = vshrl.u32 %v2752, 23
      %v2754 = vsub.s32 %v2753, 127
      %v2755 = vand.u32 2147483647, %v2123
      %v2756 = vand.u32 %v2755, 8388607
      %v2757 = vor.u32 %v2756, 8388608
      %v2758 = vsub.s32 0, %v2757
      %v2759 = vadd.s32 %v2754, 1
      %vm2760 = vcmp.gt.s32.totalorder %v2759, 0
      %v2761 = vsel %vm2760, %v2759, 0
      %v2762 = vshrl.u32 %v2761, 5
      %v2763 = vand.u32 %v2761, 31
      %v2764 = vsub.s32 32, %v2763
      %v2765 = vshrl.u32 683565275, %v2764
      %v2766 = vshll.u32 683565275, %v2763
      %v2767 = vshrl.u32 2475754826, %v2764
      %v2768 = vor.u32 %v2766, %v2767
      %v2769 = vshll.u32 2475754826, %v2763
      %v2770 = vshrl.u32 2131351028, %v2764
      %v2771 = vor.u32 %v2769, %v2770
      %v2772 = vshll.u32 2131351028, %v2763
      %v2773 = vshrl.u32 2102212464, %v2764
      %v2774 = vor.u32 %v2772, %v2773
      %v2775 = vshll.u32 2102212464, %v2763
      %v2776 = vshrl.u32 920167782, %v2764
      %v2777 = vor.u32 %v2775, %v2776
      %v2778 = vshll.u32 920167782, %v2763
      %v2779 = vshrl.u32 1326507024, %v2764
      %v2780 = vor.u32 %v2778, %v2779
      %vm2781 = vcmp.lt.s32.totalorder %v2762, 1
      %vm2782 = vcmp.lt.s32.totalorder %v2762, 2
      %vm2783 = vcmp.lt.s32.totalorder %v2762, 3
      %vm2784 = vcmp.lt.s32.totalorder %v2762, 4
      %v2785 = vsel %vm2781, %v2765, %v2768
      %v2786 = vsel %vm2784, %v2774, 2102212464
      %v2787 = vsel %vm2783, %v2771, %v2786
      %v2788 = vsel %vm2782, %v2785, %v2787
      %v2789 = vsel %vm2781, %v2768, %v2771
      %v2790 = vsel %vm2784, %v2777, 920167782
      %v2791 = vsel %vm2783, %v2774, %v2790
      %v2792 = vsel %vm2782, %v2789, %v2791
      %v2793 = vsel %vm2781, %v2771, %v2774
      %v2794 = vsel %vm2784, %v2780, 1326507024
      %v2795 = vsel %vm2783, %v2777, %v2794
      %v2796 = vsel %vm2782, %v2793, %v2795
      %v2797 = vshll.u32 %v2757, 8
      %v2798 = vmul.u32.u64.compose %v2797, %v2796
      %v2799 = vextract.low.u32 %v2798
      %v2800 = vextract.high.u32 %v2798
      %v2801 = vmul.u32.u64.compose %v2797, %v2792
      %v2802 = vextract.low.u32 %v2801
      %v2803 = vextract.high.u32 %v2801
      %v2804 = vmul.u32 %v2797, %v2788
      %v2805 = vadd.s32 %v2800, %v2802
      %vm2806 = vc.u32 %v2800, %v2802
      %v2807 = vadd.s32 %v2803, 1
      %v2808 = vsel %vm2806, %v2807, %v2803
      %v2809 = vadd.s32 %v2804, %v2808
      %v2810 = vadd.s32 %v2809, 536870912
      %v2811 = vshrl.u32 %v2810, 30
      %v2812 = vshll.u32 %v2811, 30
      %v2813 = vsub.s32 %v2809, %v2812
      %vm2814 = vcmp.lt.s32.totalorder %v2813, 0
      %v2815 = vsub.s32 0, %v2813
      %v2816 = vsel %vm2814, %v2815, %v2813
      %v2817 = vclz %v2816
      %v2818 = vsub.s32 %v2817, 2
      %vm2819 = vcmp.gt.s32.totalorder 0, %v2818
      %v2820 = vsel %vm2819, 0, %v2818
      %v2821 = vsub.s32 32, %v2820
      %v2822 = vshll.u32 %v2813, %v2820
      %v2823 = vshrl.u32 %v2805, %v2821
      %v2824 = vor.u32 %v2822, %v2823
      %v2825 = vsub.s32 4294967266, %v2820
      %v2826 = vadd.s32 %v2825, 127
      %v2827 = vshll.u32 %v2826, 23
      %v2828 = vor.u32 4788187, %v2827
      %v2829 = vand.u32 2147483647, %v2828
      %v2831 = vcvt.s32.f32 %v2824
      %v2832 = vmul.f32 %v2831, %v2829
      %v2833 = vxor.u32 %v2832, 2147483648
      %v2834 = vsel %vm2751, %v2833, %v2832
      %v2835 = vsub.s32 4, %v2811
      %v2836 = vsel %vm2751, %v2835, %v2811
      %v2837 = vsel %vm2750, %v2123, %v2834
      %v2838 = vsel %vm2750, 0, %v2836
      %v2839 = vcosq.f32.pop %v2837
      %v2840 = vsinq.f32.pop %v2837
      %vm2841 = vweird.f32 %v2123
      %v2842 = vadd.s32 %v2838, 3
      %v2843 = vand.u32 %v2842, 3
      %vm2844 = vcmp.lt.s32.totalorder %v2843, 2
      %vm2845 = vcmp.eq.s32.totalorder %v2843, 0
      %v2846 = vxor.u32 %v2840, 2147483648
      %v2847 = vsel %vm2845, %v2839, %v2846
      %vm2848 = vcmp.eq.s32.totalorder %v2843, 2
      %v2849 = vxor.u32 %v2839, 2147483648
      %v2850 = vsel %vm2848, %v2849, %v2840
      %v2851 = vsel %vm2844, %v2847, %v2850
      %v2852 = vsel %vm2841, nan, %v2851
      %v2853 = vand.u32 2147483647, %v2124
      %vm2854 = vcmp.le.f32.partialorder %v2853, 0.7853982
      %vm2855 = vcmp.lt.s32.totalorder %v2124, 0
      %v2856 = vand.u32 %v2124, 2139095040
      %v2857 = vshrl.u32 %v2856, 23
      %v2858 = vsub.s32 %v2857, 127
      %v2859 = vand.u32 2147483647, %v2124
      %v2860 = vand.u32 %v2859, 8388607
      %v2861 = vor.u32 %v2860, 8388608
      %v2862 = vsub.s32 0, %v2861
      %v2863 = vadd.s32 %v2858, 1
      %vm2864 = vcmp.gt.s32.totalorder %v2863, 0
      %v2865 = vsel %vm2864, %v2863, 0
      %v2866 = vshrl.u32 %v2865, 5
      %v2867 = vand.u32 %v2865, 31
      %v2868 = vsub.s32 32, %v2867
      %v2869 = vshrl.u32 683565275, %v2868
      %v2870 = vshll.u32 683565275, %v2867
      %v2871 = vshrl.u32 2475754826, %v2868
      %v2872 = vor.u32 %v2870, %v2871
      %v2873 = vshll.u32 2475754826, %v2867
      %v2874 = vshrl.u32 2131351028, %v2868
      %v2875 = vor.u32 %v2873, %v2874
      %v2876 = vshll.u32 2131351028, %v2867
      %v2877 = vshrl.u32 2102212464, %v2868
      %v2878 = vor.u32 %v2876, %v2877
      %v2879 = vshll.u32 2102212464, %v2867
      %v2880 = vshrl.u32 920167782, %v2868
      %v2881 = vor.u32 %v2879, %v2880
      %v2882 = vshll.u32 920167782, %v2867
      %v2883 = vshrl.u32 1326507024, %v2868
      %v2884 = vor.u32 %v2882, %v2883
      %vm2885 = vcmp.lt.s32.totalorder %v2866, 1
      %vm2886 = vcmp.lt.s32.totalorder %v2866, 2
      %vm2887 = vcmp.lt.s32.totalorder %v2866, 3
      %vm2888 = vcmp.lt.s32.totalorder %v2866, 4
      %v2889 = vsel %vm2885, %v2869, %v2872
      %v2890 = vsel %vm2888, %v2878, 2102212464
      %v2891 = vsel %vm2887, %v2875, %v2890
      %v2892 = vsel %vm2886, %v2889, %v2891
      %v2893 = vsel %vm2885, %v2872, %v2875
      %v2894 = vsel %vm2888, %v2881, 920167782
      %v2895 = vsel %vm2887, %v2878, %v2894
      %v2896 = vsel %vm2886, %v2893, %v2895
      %v2897 = vsel %vm2885, %v2875, %v2878
      %v2898 = vsel %vm2888, %v2884, 1326507024
      %v2899 = vsel %vm2887, %v2881, %v2898
      %v2900 = vsel %vm2886, %v2897, %v2899
      %v2901 = vshll.u32 %v2861, 8
      %v2902 = vmul.u32.u64.compose %v2901, %v2900
      %v2903 = vextract.low.u32 %v2902
      %v2904 = vextract.high.u32 %v2902
      %v2905 = vmul.u32.u64.compose %v2901, %v2896
      %v2906 = vextract.low.u32 %v2905
      %v2907 = vextract.high.u32 %v2905
      %v2908 = vmul.u32 %v2901, %v2892
      %v2909 = vadd.s32 %v2904, %v2906
      %vm2910 = vc.u32 %v2904, %v2906
      %v2911 = vadd.s32 %v2907, 1
      %v2912 = vsel %vm2910, %v2911, %v2907
      %v2913 = vadd.s32 %v2908, %v2912
      %v2914 = vadd.s32 %v2913, 536870912
      %v2915 = vshrl.u32 %v2914, 30
      %v2916 = vshll.u32 %v2915, 30
      %v2917 = vsub.s32 %v2913, %v2916
      %vm2918 = vcmp.lt.s32.totalorder %v2917, 0
      %v2919 = vsub.s32 0, %v2917
      %v2920 = vsel %vm2918, %v2919, %v2917
      %v2921 = vclz %v2920
      %v2922 = vsub.s32 %v2921, 2
      %vm2923 = vcmp.gt.s32.totalorder 0, %v2922
      %v2924 = vsel %vm2923, 0, %v2922
      %v2925 = vsub.s32 32, %v2924
      %v2926 = vshll.u32 %v2917, %v2924
      %v2927 = vshrl.u32 %v2909, %v2925
      %v2928 = vor.u32 %v2926, %v2927
      %v2929 = vsub.s32 4294967266, %v2924
      %v2930 = vadd.s32 %v2929, 127
      %v2931 = vshll.u32 %v2930, 23
      %v2932 = vor.u32 4788187, %v2931
      %v2933 = vand.u32 2147483647, %v2932
      %v2935 = vcvt.s32.f32 %v2928
      %v2936 = vmul.f32 %v2935, %v2933
      %v2937 = vxor.u32 %v2936, 2147483648
      %v2938 = vsel %vm2855, %v2937, %v2936
      %v2939 = vsub.s32 4, %v2915
      %v2940 = vsel %vm2855, %v2939, %v2915
      %v2941 = vsel %vm2854, %v2124, %v2938
      %v2942 = vsel %vm2854, 0, %v2940
      %v2943 = vcosq.f32.pop %v2941
      %v2944 = vsinq.f32.pop %v2941
      %vm2945 = vweird.f32 %v2124
      %v2946 = vadd.s32 %v2942, 3
      %v2947 = vand.u32 %v2946, 3
      %vm2948 = vcmp.lt.s32.totalorder %v2947, 2
      %vm2949 = vcmp.eq.s32.totalorder %v2947, 0
      %v2950 = vxor.u32 %v2944, 2147483648
      %v2951 = vsel %vm2949, %v2943, %v2950
      %vm2952 = vcmp.eq.s32.totalorder %v2947, 2
      %v2953 = vxor.u32 %v2943, 2147483648
      %v2954 = vsel %vm2952, %v2953, %v2944
      %v2955 = vsel %vm2948, %v2951, %v2954
      %v2956 = vsel %vm2945, nan, %v2955
      %2957 = vst [vmem:[%s271 + $0x100] sm:$0xff] %v2228
      %2958 = vst [vmem:[%s271 + $0x108] sm:$0xff] %v2332
      %2959 = vst [vmem:[%s271 + $0x110] sm:$0xff] %v2436
      %2960 = vst [vmem:[%s271 + $0x118] sm:$0xff] %v2540
      %2961 = vst [vmem:[%s271 + $0x120] sm:$0xff] %v2644
      %2962 = vst [vmem:[%s271 + $0x128] sm:$0xff] %v2748
      %2963 = vst [vmem:[%s271 + $0x130] sm:$0xff] %v2852
      %2964 = vst [vmem:[%s271 + $0x138] sm:$0xff] %v2956
      %s2965 = smul.u32 4, %s20
      %p2966 = scmp.lt.s32.totalorder %s19, 1
      %s2967 = scalar_select %p2966, %s19, 1
      %p2968 = scmp.lt.s32.totalorder %s2965, 3
      %s2969 = scalar_select %p2968, %s2965, 3
      %s2970 = smul.addr %s2967, 40
      %s2971 = sadd.s32 %s2969, %s2970
      %s2972 = smul.addr %s2971, 8
      %s2973 = scalar_lea.vmem %s4, %s2972
      // Predicated region
      $region37: #{pose_geo.1} parent=35 // pred_check
        %p2974 = pneg %p145
      $region38: #{pose_geo.1} parent=35 // pred_check_branch
        %2976 = sbr.rel (%p2974) target = $region40
      $region39: #{pose_geo.1} parent=35 // pred_region
        %s2977 = smul.u32 4, %s20
      $region40: #{pose_geo.1} parent=35 // pred_fallthru
        _
    $region36: #{pose_geo.1} parent=5 // pred_fallthru
      _
    %p2978 = scmp.le.s32.totalorder 2, %s10
    // Predicated region
    $region41: #{pose_geo.1} parent=5 // pred_check
      %p2979 = pneg %p2978
    $region42: #{pose_geo.1} parent=5 // pred_check_branch
      %2981 = sbr.rel (%p2979) target = $region44
    $region43: #{pose_geo.1} parent=5 // pred_region
      %s2982 = ssub.s32 %s10, 2
      // Predicated region
      $region45: #{pose_geo.1} parent=43 // pred_check
        %p2983 = pneg %p151
      $region46: #{pose_geo.1} parent=43 // pred_check_branch
        %2985 = sbr.rel (%p2983) target = $region48
      $region47: #{pose_geo.1} parent=43 // pred_region
        %s2986 = smul.u32 4, %s22
        %p2987 = scmp.lt.s32.totalorder %s21, 1
        %s2988 = scalar_select %p2987, %s21, 1
        %p2989 = scmp.lt.s32.totalorder %s2986, 3
        %s2990 = scalar_select %p2989, %s2986, 3
        %s2991 = smul.addr %s2988, 40
        %s2992 = sadd.s32 %s2990, %s2991
        %s2993 = smul.addr %s2992, 8
        %s2994 = scalar_lea.vmem %s4, %s2993
      $region48: #{pose_geo.1} parent=43 // pred_fallthru
        _
    $region44: #{pose_geo.1} parent=5 // pred_fallthru
      _
  $region6: #{pose_geo.1} parent=0 // loop_footer
    %s14 = sadd.s32 1, %s10
  $region7: #{pose_geo.1} parent=0 // loop_footer_branch
    %9 = sbr.rel target = $region3
  $region8: #{pose_geo.1} parent=0 // loop_exit
    _

</llo_original>
